<compile_context>
chip_gen: v6e
topology: v6e:2x2x1
jax: 0.10.0
libtpu: 0.0.40
codegen_flags: <defaults>
</compile_context>

<pallas_src>
import functools
import math

import jax
import jax.numpy as jnp
from jax.experimental import pallas as pl
from jax.experimental.pallas import tpu as pltpu


def _attn_kernel(q_ref, k_ref, v_ref, o_ref, q_sc, m_sc, l_sc, acc_sc, *,
                 scale2):
    """One (head-group, q-tile, kv-tile) flash-attention step.

    q_ref:  (G, ch, Tq)   k_ref / v_ref: (G, ch, Tk)   o_ref: (G, ch, Tq)
    q_sc:   (G, ch, Tq)   input-dtype scratch (scaled q, written once / q tile)
    m_sc/l_sc: (G, Tq, 1) f32 scratch    acc_sc: (G, Tq, ch) f32 scratch
    """
    ki = pl.program_id(2)

    @pl.when(ki == 0)
    def _():
        # Both 1/sqrt(sqrt(ch)) factors folded into q, applied ONCE per q tile
        # and reused across all kv steps (no per-step scale / transpose work).
        q_sc[...] = (q_ref[...] * scale2).astype(q_sc.dtype)
        m_sc[...] = jnp.full_like(m_sc, -jnp.inf)
        l_sc[...] = jnp.zeros_like(l_sc)
        acc_sc[...] = jnp.zeros_like(acc_sc)

    k = k_ref[...]
    v = v_ref[...]

    # s[g,t,s'] = sum_c q[g,c,t] * k[g,c,s'] : contract dim 1 of BOTH operands
    # (no explicit XLU transpose of q); f32 accumulation on the MXU.
    s = jnp.einsum("gct,gcs->gts", q_sc[...], k,
                   preferred_element_type=jnp.float32)        # (G, Tq, Tk)

    m_prev = m_sc[...]
    m_new = jnp.maximum(m_prev, jnp.max(s, axis=-1, keepdims=True))
    alpha = jnp.exp(m_prev - m_new)
    p = jnp.exp(s - m_new)                                    # f32 probabilities

    l_sc[...] = alpha * l_sc[...] + jnp.sum(p, axis=-1, keepdims=True)
    # acc[g,t,c] += sum_s p[g,t,s] * v[g,c,s]; p is cast back to the input
    # dtype (matches torch's weight.type(weight.dtype); bf16 MXU rate when
    # the model feeds bf16).
    acc_sc[...] = alpha * acc_sc[...] + jnp.einsum(
        "gts,gcs->gtc", p.astype(v.dtype), v,
        preferred_element_type=jnp.float32)
    m_sc[...] = m_new

    @pl.when(ki == pl.num_programs(2) - 1)
    def _():
        # Exact divide: runs once per q tile (epilogue), negligible cost,
        # closer numerics to the torch module than an approx reciprocal.
        out = acc_sc[...] / l_sc[...]                         # (G, Tq, ch)
        # Single in-kernel transpose back to channel-major: lane-dense stores
        # (T on the lane axis), no HBM-round-trip transpose in the wrapper.
        o_ref[...] = jnp.transpose(out, (0, 2, 1)).astype(o_ref.dtype)


def _tpu_budgets():
    """(vmem_limit_bytes, per-step VMEM budget, multi_core) for this chip."""
    cap = None
    try:
        cap = int(pltpu.get_tpu_info().vmem_capacity_bytes)
    except Exception:
        cap = None
    if cap is None:
        cap = 64 * 1024 * 1024              # conservative default (v7x per-TC)
    if cap <= 80 * 1024 * 1024:             # v7x: 64 MiB / TC, 2 TCs per chip
        return 44 * 1024 * 1024, 16 * 1024 * 1024, True
    # v5e / v6e: 128 MiB VMEM, single TensorCore per chip.
    return 64 * 1024 * 1024, 28 * 1024 * 1024, False


def _step_bytes(g, ch, tq, tk, itemsize):
    """Rough per-grid-step VMEM usage for a head-group of size g."""
    io = 2 * itemsize * g * ch * (2 * tq + 2 * tk)      # dbl-buffered q,k,v,out
    scratch = itemsize * g * ch * tq + 4 * g * (tq * ch + 2 * tq)  # q_sc,acc,m,l
    temps = 4 * g * (2 * tq * tk + tq * ch) \
        + itemsize * g * (tq * tk + tq * ch)            # s, p, pv, casts
    return io + scratch + temps


def _choose_tiling(B, ch, T, itemsize, budget, multi_core):
    """Asymmetric tiles: tq as large as fits, tk capped at 128; largest
    head group G (divisor of B) whose per-step footprint fits the budget."""
    tk = 128 if T % 128 == 0 else T
    q_cands = [c for c in (1024, 768, 640, 512, 384, 256, 128)
               if c <= T and T % c == 0]
    if not q_cands:
        q_cands = [T]
    divisors = [g for g in range(1, B + 1) if B % g == 0]
    for tq in q_cands:                                   # largest tq first
        nq = T // tq
        fitting = [g for g in divisors
                   if _step_bytes(g, ch, tq, tk, itemsize) <= budget]
        if not fitting:
            continue
        if multi_core:
            # Keep >= 2 parallel grid steps so both v7x TensorCores get work.
            pref = [g for g in fitting if (B // g) * nq >= 2]
            if pref:
                return max(pref), tq, tk
        return max(fitting), tq, tk
    return 1, q_cands[-1], tk


def qkv_attention_legacy(qkv, n_heads):
    """Pallas TPU implementation of QKVAttentionLegacy.forward.

    qkv: (bs, width, length) with width = 3 * n_heads * ch.
    Returns (bs, n_heads * ch, length), same dtype as qkv.
    """
    bs, width, length = qkv.shape
    assert width % (3 * n_heads) == 0
    ch = width // (3 * n_heads)
    B = bs * n_heads
    T = length
    dtype = qkv.dtype
    itemsize = jnp.dtype(dtype).itemsize
    scale2 = 1.0 / math.sqrt(ch)            # = (1/sqrt(sqrt(ch)))**2

    # Sublane-alignment guard: k/v blocks start at offsets ch and 2*ch along
    # the (sublane) 3*ch axis, so ch must be a multiple of the dtype's native
    # sublane tile (8 for 4-byte, 16 for 2-byte, 32 for 1-byte dtypes).
    sublane = {4: 8, 2: 16, 1: 32}.get(itemsize, 8)
    if ch % sublane != 0 or T < 128:
        # Small-T / misaligned-ch path: lane-masked stores and per-step
        # pipeline overhead would dominate in the kernel.
        # TODO(synk): pack several heads onto the lane axis for T < 128
        # instead of falling back to the fused XLA reference.
        return qkv_attention_legacy_ref(qkv, n_heads)

    vmem_limit, budget, multi_core = _tpu_budgets()
    G, tq, tk = _choose_tiling(B, ch, T, itemsize, budget, multi_core)
    nq, nk = T // tq, T // tk

    # Free contiguous reshape: (bs, 3*n_heads*ch, T) -> (B, 3*ch, T).
    # q/k/v are carved out by the BlockSpecs (block index 0/1/2 on axis 1).
    qkv_r = qkv.reshape(B, 3 * ch, T)

    q_spec = pl.BlockSpec((G, ch, tq), lambda b, qi, ki: (b, 0, qi))
    # TODO(synk): sweep pipeline_mode=pl.Buffered(3) on k/v for v6e when VMEM
    # headroom remains (hides per-kv-step K/V DMA at tile boundaries).
    k_spec = pl.BlockSpec((G, ch, tk), lambda b, qi, ki: (b, 1, ki))
    v_spec = pl.BlockSpec((G, ch, tk), lambda b, qi, ki: (b, 2, ki))
    o_spec = pl.BlockSpec((G, ch, tq), lambda b, qi, ki: (b, 0, qi))

    out = pl.pallas_call(
        functools.partial(_attn_kernel, scale2=scale2),
        out_shape=jax.ShapeDtypeStruct((B, ch, T), dtype),
        grid_spec=pltpu.PrefetchScalarGridSpec(
            num_scalar_prefetch=0,
            grid=(B // G, nq, nk),
            in_specs=[q_spec, k_spec, v_spec],
            out_specs=o_spec,
            scratch_shapes=[
                pltpu.VMEM((G, ch, tq), dtype),          # scaled q (per q tile)
                pltpu.VMEM((G, tq, 1), jnp.float32),     # running max
                pltpu.VMEM((G, tq, 1), jnp.float32),     # running sum
                pltpu.VMEM((G, tq, ch), jnp.float32),    # output accumulator
            ],
        ),
        compiler_params=pltpu.CompilerParams(
            dimension_semantics=("parallel", "parallel", "arbitrary"),
            vmem_limit_bytes=vmem_limit,
        ),
    )(qkv_r, qkv_r, qkv_r)   # q/k/v carved out of the same array by the specs

    return out.reshape(bs, n_heads * ch, length)


def qkv_attention_legacy_ref(qkv, n_heads):
    """Pure-JAX reference matching the PyTorch module exactly."""
    bs, width, length = qkv.shape
    ch = width // (3 * n_heads)
    B = bs * n_heads
    qkv_r = qkv.reshape(B, 3 * ch, length)
    q, k, v = qkv_r[:, :ch], qkv_r[:, ch:2 * ch], qkv_r[:, 2 * ch:]
    scale = 1.0 / math.sqrt(math.sqrt(ch))
    w = jnp.einsum('bct,bcs->bts', q * scale, k * scale)
    w = jax.nn.softmax(w.astype(jnp.float32), axis=-1).astype(w.dtype)
    a = jnp.einsum('bts,bcs->bct', w, v)
    return a.reshape(bs, -1, length)


def _check(qkv, n_heads):
    out = jax.block_until_ready(qkv_attention_legacy(qkv, n_heads))
    ref = qkv_attention_legacy_ref(qkv, n_heads)
    assert out.shape == ref.shape, (out.shape, ref.shape)
    err = float(jnp.max(jnp.abs(out - ref)))
    # Tolerance covers f32 accumulation-order differences of the flash
    # formulation vs. the monolithic softmax.
    assert jnp.allclose(out, ref, atol=2e-3, rtol=2e-3), err


if __name__ == "__main__":
    k0, k1, k2 = jax.random.split(jax.random.PRNGKey(0), 3)

    # Small, module-consistent shape (bs=2, n_heads=4, ch=32, T=16):
    # exercises the dedicated small-T dispatch path.
    qkv0 = jax.random.normal(k0, (2, 3 * 4 * 32, 16), jnp.float32)
    _check(qkv0, 4)

    # Exercises the tiled flash path with a KV reduction: bs=1, n_heads=2,
    # ch=64, T=256 -> tq=256, tk=128, grid (B, 1, 2) with online softmax.
    qkv1 = jax.random.normal(k1, (1, 3 * 2 * 64, 256), jnp.float32)
    _check(qkv1, 2)

    # Module-like channel count (768 = 4 heads x 192 ch) at T=128: exercises
    # head grouping and the channel-offset q/k/v BlockSpecs.
    qkv2 = jax.random.normal(k2, (2, 3 * 4 * 192, 128), jnp.float32)
    _check(qkv2, 4)

    print("KERNEL_OK")
</pallas_src>

<mosaic_0001>
module attributes {stable_mosaic.version = 11 : i64} {
  func.func @_attn_kernel(%arg0: i32, %arg1: i32, %arg2: i32, %arg3: memref<1x64x256xf32, #tpu.memory_space<vmem>>, %arg4: memref<1x64x128xf32, #tpu.memory_space<vmem>>, %arg5: memref<1x64x128xf32, #tpu.memory_space<vmem>>, %arg6: memref<1x64x256xf32, #tpu.memory_space<vmem>>, %arg7: memref<1x64x256xf32, #tpu.memory_space<vmem>>, %arg8: memref<1x256x1xf32, #tpu.memory_space<vmem>>, %arg9: memref<1x256x1xf32, #tpu.memory_space<vmem>>, %arg10: memref<1x256x64xf32, #tpu.memory_space<vmem>>) attributes {dimension_semantics = [#tpu.dimension_semantics<parallel>, #tpu.dimension_semantics<parallel>, #tpu.dimension_semantics<arbitrary>], iteration_bounds = array<i64: 2, 1, 2>, scalar_prefetch = 0 : i64, scratch_operands = 4 : i64, tpu.core_type = #tpu.core_type<tc>, window_params = [{transform_indices = @transform_0, window_bounds = array<i64: 1, 64, 256>}, {transform_indices = @transform_1, window_bounds = array<i64: 1, 64, 128>}, {transform_indices = @transform_2, window_bounds = array<i64: 1, 64, 128>}, {transform_indices = @transform_3, window_bounds = array<i64: 1, 64, 256>}]} {
    %c0_i32 = arith.constant 0 : i32
    %0 = arith.cmpi eq, %arg2, %c0_i32 : i32
    %1 = arith.extui %0 : i1 to i32
    %c0_i32_0 = arith.constant 0 : i32
    %2 = arith.cmpi ne, %1, %c0_i32_0 : i32
    scf.if %2 {
      %c0_31 = arith.constant 0 : index
      %c0_32 = arith.constant 0 : index
      %c0_33 = arith.constant 0 : index
      %32 = vector.load %arg3[%c0_31, %c0_32, %c0_33] : memref<1x64x256xf32, #tpu.memory_space<vmem>>, vector<1x64x256xf32>
      %cst_34 = arith.constant 1.250000e-01 : f32
      %33 = vector.broadcast %cst_34 : f32 to vector<1x64x256xf32>
      %34 = arith.mulf %32, %33 : vector<1x64x256xf32>
      %c0_35 = arith.constant 0 : index
      %c0_36 = arith.constant 0 : index
      %c0_37 = arith.constant 0 : index
      %35 = vector.load %arg7[%c0_35, %c0_36, %c0_37] : memref<1x64x256xf32, #tpu.memory_space<vmem>>, vector<1x64x256xf32>
      tpu.vector_store %arg7[%c0_35, %c0_36, %c0_37], %34 {strides = array<i32>} : memref<1x64x256xf32, #tpu.memory_space<vmem>>, vector<1x64x256xf32>,
      %cst_38 = arith.constant 0xFF800000 : f32
      %36 = vector.broadcast %cst_38 : f32 to vector<1x256x1xf32>
      %c0_39 = arith.constant 0 : index
      %c0_40 = arith.constant 0 : index
      %c0_41 = arith.constant 0 : index
      %37 = vector.load %arg8[%c0_39, %c0_40, %c0_41] : memref<1x256x1xf32, #tpu.memory_space<vmem>>, vector<1x256x1xf32>
      tpu.vector_store %arg8[%c0_39, %c0_40, %c0_41], %36 {strides = array<i32>} : memref<1x256x1xf32, #tpu.memory_space<vmem>>, vector<1x256x1xf32>,
      %cst_42 = arith.constant 0.000000e+00 : f32
      %38 = vector.broadcast %cst_42 : f32 to vector<1x256x1xf32>
      %c0_43 = arith.constant 0 : index
      %c0_44 = arith.constant 0 : index
      %c0_45 = arith.constant 0 : index
      %39 = vector.load %arg9[%c0_43, %c0_44, %c0_45] : memref<1x256x1xf32, #tpu.memory_space<vmem>>, vector<1x256x1xf32>
      tpu.vector_store %arg9[%c0_43, %c0_44, %c0_45], %38 {strides = array<i32>} : memref<1x256x1xf32, #tpu.memory_space<vmem>>, vector<1x256x1xf32>,
      %cst_46 = arith.constant 0.000000e+00 : f32
      %40 = vector.broadcast %cst_46 : f32 to vector<1x256x64xf32>
      %c0_47 = arith.constant 0 : index
      %c0_48 = arith.constant 0 : index
      %c0_49 = arith.constant 0 : index
      %41 = vector.load %arg10[%c0_47, %c0_48, %c0_49] : memref<1x256x64xf32, #tpu.memory_space<vmem>>, vector<1x256x64xf32>
      tpu.vector_store %arg10[%c0_47, %c0_48, %c0_49], %40 {strides = array<i32>} : memref<1x256x64xf32, #tpu.memory_space<vmem>>, vector<1x256x64xf32>,
    } else {
    }
    %c0 = arith.constant 0 : index
    %c0_1 = arith.constant 0 : index
    %c0_2 = arith.constant 0 : index
    %3 = vector.load %arg4[%c0, %c0_1, %c0_2] : memref<1x64x128xf32, #tpu.memory_space<vmem>>, vector<1x64x128xf32>
    %c0_3 = arith.constant 0 : index
    %c0_4 = arith.constant 0 : index
    %c0_5 = arith.constant 0 : index
    %4 = vector.load %arg5[%c0_3, %c0_4, %c0_5] : memref<1x64x128xf32, #tpu.memory_space<vmem>>, vector<1x64x128xf32>
    %c0_6 = arith.constant 0 : index
    %c0_7 = arith.constant 0 : index
    %c0_8 = arith.constant 0 : index
    %5 = vector.load %arg7[%c0_6, %c0_7, %c0_8] : memref<1x64x256xf32, #tpu.memory_space<vmem>>, vector<1x64x256xf32>
    "tpu.trace_start"() <{level = 10 : i32, message = "gct,gcs->gts"}> : () -> ()
    %cst = arith.constant dense<0.000000e+00> : vector<1x256x128xf32>
    %6 = tpu.matmul %5, %3, %cst {dimension_numbers = #tpu.dot_dimension_numbers<[1], [1], [2], [2], [0, 0, 0, 2, 1, 2], [0], [0]>} : vector<1x64x256xf32>, vector<1x64x128xf32>, vector<1x256x128xf32> -> vector<1x256x128xf32>
    "tpu.trace_stop"() : () -> ()
    %c0_9 = arith.constant 0 : index
    %c0_10 = arith.constant 0 : index
    %c0_11 = arith.constant 0 : index
    %7 = vector.load %arg8[%c0_9, %c0_10, %c0_11] : memref<1x256x1xf32, #tpu.memory_space<vmem>>, vector<1x256x1xf32>
    %cst_12 = arith.constant dense<0xFF800000> : vector<1x256xf32>
    %8 = vector.multi_reduction <maximumf>, %6, %cst_12 [2] : vector<1x256x128xf32> to vector<1x256xf32>
    %9 = vector.shape_cast %8 : vector<1x256xf32> to vector<1x256x1xf32>
    %10 = arith.maximumf %7, %9 : vector<1x256x1xf32>
    %11 = arith.subf %7, %10 : vector<1x256x1xf32>
    %12 = math.exp %11 : vector<1x256x1xf32>
    %13 = vector.broadcast %10 : vector<1x256x1xf32> to vector<1x256x128xf32>
    %14 = arith.subf %6, %13 : vector<1x256x128xf32>
    %15 = math.exp %14 : vector<1x256x128xf32>
    %c0_13 = arith.constant 0 : index
    %c0_14 = arith.constant 0 : index
    %c0_15 = arith.constant 0 : index
    %16 = vector.load %arg9[%c0_13, %c0_14, %c0_15] : memref<1x256x1xf32, #tpu.memory_space<vmem>>, vector<1x256x1xf32>
    %17 = arith.mulf %12, %16 : vector<1x256x1xf32>
    %cst_16 = arith.constant dense<0.000000e+00> : vector<1x256xf32>
    %18 = vector.multi_reduction <add>, %15, %cst_16 [2] : vector<1x256x128xf32> to vector<1x256xf32>
    %19 = vector.shape_cast %18 : vector<1x256xf32> to vector<1x256x1xf32>
    %20 = arith.addf %17, %19 : vector<1x256x1xf32>
    %c0_17 = arith.constant 0 : index
    %c0_18 = arith.constant 0 : index
    %c0_19 = arith.constant 0 : index
    %21 = vector.load %arg9[%c0_17, %c0_18, %c0_19] : memref<1x256x1xf32, #tpu.memory_space<vmem>>, vector<1x256x1xf32>
    tpu.vector_store %arg9[%c0_17, %c0_18, %c0_19], %20 {strides = array<i32>} : memref<1x256x1xf32, #tpu.memory_space<vmem>>, vector<1x256x1xf32>,
    %c0_20 = arith.constant 0 : index
    %c0_21 = arith.constant 0 : index
    %c0_22 = arith.constant 0 : index
    %22 = vector.load %arg10[%c0_20, %c0_21, %c0_22] : memref<1x256x64xf32, #tpu.memory_space<vmem>>, vector<1x256x64xf32>
    %23 = vector.broadcast %12 : vector<1x256x1xf32> to vector<1x256x64xf32>
    %24 = arith.mulf %23, %22 : vector<1x256x64xf32>
    "tpu.trace_start"() <{level = 10 : i32, message = "gts,gcs->gtc"}> : () -> ()
    %cst_23 = arith.constant dense<0.000000e+00> : vector<1x256x64xf32>
    %25 = tpu.matmul %15, %4, %cst_23 {dimension_numbers = #tpu.dot_dimension_numbers<[2], [2], [1], [1], [0, 0, 0, 1, 1, 1], [0], [0]>} : vector<1x256x128xf32>, vector<1x64x128xf32>, vector<1x256x64xf32> -> vector<1x256x64xf32>
    "tpu.trace_stop"() : () -> ()
    %26 = arith.addf %24, %25 : vector<1x256x64xf32>
    %c0_24 = arith.constant 0 : index
    %c0_25 = arith.constant 0 : index
    %c0_26 = arith.constant 0 : index
    %27 = vector.load %arg10[%c0_24, %c0_25, %c0_26] : memref<1x256x64xf32, #tpu.memory_space<vmem>>, vector<1x256x64xf32>
    tpu.vector_store %arg10[%c0_24, %c0_25, %c0_26], %26 {strides = array<i32>} : memref<1x256x64xf32, #tpu.memory_space<vmem>>, vector<1x256x64xf32>,
    %c0_27 = arith.constant 0 : index
    %c0_28 = arith.constant 0 : index
    %c0_29 = arith.constant 0 : index
    %28 = vector.load %arg8[%c0_27, %c0_28, %c0_29] : memref<1x256x1xf32, #tpu.memory_space<vmem>>, vector<1x256x1xf32>
    tpu.vector_store %arg8[%c0_27, %c0_28, %c0_29], %10 {strides = array<i32>} : memref<1x256x1xf32, #tpu.memory_space<vmem>>, vector<1x256x1xf32>,
    %c1_i32 = arith.constant 1 : i32
    %29 = arith.cmpi eq, %arg2, %c1_i32 : i32
    %30 = arith.extui %29 : i1 to i32
    %c0_i32_30 = arith.constant 0 : i32
    %31 = arith.cmpi ne, %30, %c0_i32_30 : i32
    scf.if %31 {
      %c0_31 = arith.constant 0 : index
      %c0_32 = arith.constant 0 : index
      %c0_33 = arith.constant 0 : index
      %32 = vector.load %arg10[%c0_31, %c0_32, %c0_33] : memref<1x256x64xf32, #tpu.memory_space<vmem>>, vector<1x256x64xf32>
      %c0_34 = arith.constant 0 : index
      %c0_35 = arith.constant 0 : index
      %c0_36 = arith.constant 0 : index
      %33 = vector.load %arg9[%c0_34, %c0_35, %c0_36] : memref<1x256x1xf32, #tpu.memory_space<vmem>>, vector<1x256x1xf32>
      %34 = vector.broadcast %33 : vector<1x256x1xf32> to vector<1x256x64xf32>
      %35 = arith.divf %32, %34 : vector<1x256x64xf32>
      %36 = tpu.transpose %35, [0, 2, 1] : vector<1x256x64xf32> -> vector<1x64x256xf32>
      %c0_37 = arith.constant 0 : index
      %c0_38 = arith.constant 0 : index
      %c0_39 = arith.constant 0 : index
      %37 = vector.load %arg6[%c0_37, %c0_38, %c0_39] : memref<1x64x256xf32, #tpu.memory_space<vmem>>, vector<1x64x256xf32>
      tpu.vector_store %arg6[%c0_37, %c0_38, %c0_39], %36 {strides = array<i32>} : memref<1x64x256xf32, #tpu.memory_space<vmem>>, vector<1x64x256xf32>,
    } else {
    }
    return
  }
  func.func @transform_0(%arg0: i32, %arg1: i32, %arg2: i32) -> (i32, i32, i32) {
    %c0_i32 = arith.constant 0 : i32
    %c0_i32_0 = arith.constant 0 : i32
    return %arg0, %c0_i32, %arg1 : i32, i32, i32
  }
  func.func @transform_1(%arg0: i32, %arg1: i32, %arg2: i32) -> (i32, i32, i32) {
    %c1_i32 = arith.constant 1 : i32
    %c0_i32 = arith.constant 0 : i32
    return %arg0, %c1_i32, %arg2 : i32, i32, i32
  }
  func.func @transform_2(%arg0: i32, %arg1: i32, %arg2: i32) -> (i32, i32, i32) {
    %c2_i32 = arith.constant 2 : i32
    %c0_i32 = arith.constant 0 : i32
    return %arg0, %c2_i32, %arg2 : i32, i32, i32
  }
  func.func @transform_3(%arg0: i32, %arg1: i32, %arg2: i32) -> (i32, i32, i32) {
    %c0_i32 = arith.constant 0 : i32
    %c0_i32_0 = arith.constant 0 : i32
    return %arg0, %c0_i32, %arg1 : i32, i32, i32
  }
}

</mosaic_0001>

<llo_original>
// kernel: tpu_custom_call.1
$region0: #{tpu_custom_call.1}
  #allocation0 [shape = 'u32[]', space=smem, size = 0x4, offset = 0x4, fixed_abs, tag = 'smem constant byte address 0x4 - core index']
  #allocation1 [shape = 'u32[144,128]{1,0:T(1,128)}', space=vmem, size = 0x12000, scoped, tag = 'internal scratch']
  #allocation2 [shape = 'f32[1,64,256]{2,1,0:T(8,128)}', space=vmem, size = 0x10000, scoped, tag = 'scratch operand']
  #allocation3 [shape = 'f32[1,256,1]{2,1,0:T(8,128)}', space=vmem, size = 0x20000, scoped, tag = 'scratch operand']
  #allocation4 [shape = 'f32[1,256,1]{2,1,0:T(8,128)}', space=vmem, size = 0x20000, scoped, tag = 'scratch operand']
  #allocation5 [shape = 'f32[1,256,64]{2,1,0:T(8,128)}', space=vmem, size = 0x20000, scoped, tag = 'scratch operand']
  %s0 = inlined_call_operand.hbm [shape: f32[2,192,256], index: 0, kind: input, shape index: {}]
  %s1 = inlined_call_operand.hbm [shape: f32[2,192,256], index: 1, kind: input, shape index: {}]
  %s2 = inlined_call_operand.hbm [shape: f32[2,192,256], index: 2, kind: input, shape index: {}]
  %s3 = inlined_call_operand.hbm [shape: f32[2,64,256], index: 3, kind: output, shape index: {}]
  %s4 = sld [smem:[#allocation0]]
  $region65: #{tpu_custom_call.1} parent=0
    _
  %s6 = ssub.s32 1, %s4
  %s7 = scalar_select 0, %s6, %s4
  $region1: #{tpu_custom_call.1} parent=0
    #allocation6 [shape = 'u8[131072]{0}', space=vmem, size = 0x20000, scoped, tag = 'input window, operand 0']
    #allocation7 [shape = 's32[2]{0}', space=sflag, size = 0x8, scoped, tag = 'scoped memory for tpu_custom_call.1']
    #allocation8 [shape = 's32[2]{0}', space=sflag, size = 0x8, scoped, tag = 'scoped memory for tpu_custom_call.1']
    #allocation9 [shape = 'u8[65536]{0}', space=vmem, size = 0x10000, scoped, tag = 'input window, operand 1']
    #allocation10 [shape = 's32[2]{0}', space=sflag, size = 0x8, scoped, tag = 'scoped memory for tpu_custom_call.1']
    #allocation11 [shape = 'u8[65536]{0}', space=vmem, size = 0x10000, scoped, tag = 'input window, operand 2']
    #allocation12 [shape = 'u8[131072]{0}', space=vmem, size = 0x20000, scoped, tag = 'output window, operand 0']
    %8 = vsyncpa [#allocation7], 0
    %s9 = scalar_lea.sflag [#allocation7], 1
    %10 = vsyncpa %s9, 0
    %11 = vsyncpa [#allocation10], 0
    %s12 = scalar_lea.sflag [#allocation10], 1
    %13 = vsyncpa %s12, 0
    %14 = vsyncpa [#allocation8], 0
    %s15 = scalar_lea.sflag [#allocation8], 1
    %16 = vsyncpa %s15, 0
    loop: start=0, step=1, limit=6
    $region2: #{tpu_custom_call.1} parent=1 // loop_pre_header
      _
    $region3: #{tpu_custom_call.1} parent=1 // loop_header
      %s18 = sphi 0, %s22
      %p19 = scmp.ge.s32.totalorder %s18, 6
      %s25 = sphi 0, %s44
      %s26 = sphi 0, %s40
      %s27 = sphi 0, %s36
      %s28 = sphi 0, %s25
      %s29 = sphi 0, %s26
      %s30 = sphi 0, %s27
      %s31 = sphi 0, %s28
      %s32 = sphi 0, %s29
      %s33 = sphi 0, %s30
      %s49 = sphi 0, %s51
      %s52 = sphi 0, %s49
      %s53 = sphi 0, %s52
      %s69 = sphi 0, %s53
      %s77 = sphi 0, %s79
      %s80 = sphi 0, %s77
      %s81 = sphi 0, %s80
      %s97 = sphi 0, %s81
      %s105 = sphi 0, %s107
      %s108 = sphi 0, %s105
      %s109 = sphi 0, %s108
      %s125 = sphi 0, %s109
      %s133 = sphi 0, %s135
      %s136 = sphi 0, %s133
      %s137 = sphi 0, %s136
      %s153 = sphi 0, %s137
    $region4: #{tpu_custom_call.1} parent=1 // loop_header_branch
      %21 = sbr.rel (%p19) target = $region8
    $region5: #{tpu_custom_call.1} parent=1 // loop_body
      %s23 = ssub.s32 %s18, 1
      %s24 = ssub.s32 %s18, 2
      %s34 = sadd.s32 1, %s27
      %p35 = scmp.ge.s32.totalorder %s34, 2
      %s36 = scalar_select %p35, 0, %s34
      %s37 = sadd.s32 1, %s26
      %s38 = scalar_select %p35, %s37, %s26
      %p39 = scmp.ge.s32.totalorder %s38, 1
      %s40 = scalar_select %p39, 0, %s38
      %s41 = sadd.s32 1, %s25
      %s42 = scalar_select %p39, %s41, %s25
      %p43 = scmp.ge.s32.totalorder %s42, 2
      %s44 = scalar_select %p43, 0, %s42
      %s45 = ssub.s32 %s25, %s44
      %s46 = ssub.s32 %s26, %s40
      %s47 = sor.u32 %s45, %s46
      %p48 = scmp.eq.s32.totalorder %s47, 0
      %s50 = sadd.s32 %s49, 1
      %s51 = scalar_select %p48, %s49, %s50
      %p54 = pneg %p48
      %p55 = scmp.eq.s32.totalorder %s18, 3
      %p56 = por %p54, %p55
      %p57 = scmp.ne.s32.totalorder %s49, %s52
      %p58 = scmp.eq.s32.totalorder %s18, 0
      %p59 = por %p57, %p58
      %p60 = scmp.ne.s32.totalorder %s49, %s52
      %p61 = scmp.eq.s32.totalorder %s23, 3
      %p62 = por %p60, %p61
      %p63 = scmp.ne.s32.totalorder %s52, %s53
      %p64 = scmp.eq.s32.totalorder %s23, 0
      %p65 = por %p63, %p64
      %p66 = scmp.ne.s32.totalorder %s52, %s53
      %p67 = scmp.eq.s32.totalorder %s24, 3
      %p68 = por %p66, %p67
      %p70 = scmp.ne.s32.totalorder %s53, %s69
      %p71 = scmp.eq.s32.totalorder %s24, 0
      %p72 = por %p70, %p71
      %s73 = ssub.s32 %s25, %s44
      %s74 = ssub.s32 %s27, %s36
      %s75 = sor.u32 %s73, %s74
      %p76 = scmp.eq.s32.totalorder %s75, 0
      %s78 = sadd.s32 %s77, 1
      %s79 = scalar_select %p76, %s77, %s78
      %p82 = pneg %p76
      %p83 = scmp.eq.s32.totalorder %s18, 3
      %p84 = por %p82, %p83
      %p85 = scmp.ne.s32.totalorder %s77, %s80
      %p86 = scmp.eq.s32.totalorder %s18, 0
      %p87 = por %p85, %p86
      %p88 = scmp.ne.s32.totalorder %s77, %s80
      %p89 = scmp.eq.s32.totalorder %s23, 3
      %p90 = por %p88, %p89
      %p91 = scmp.ne.s32.totalorder %s80, %s81
      %p92 = scmp.eq.s32.totalorder %s23, 0
      %p93 = por %p91, %p92
      %p94 = scmp.ne.s32.totalorder %s80, %s81
      %p95 = scmp.eq.s32.totalorder %s24, 3
      %p96 = por %p94, %p95
      %p98 = scmp.ne.s32.totalorder %s81, %s97
      %p99 = scmp.eq.s32.totalorder %s24, 0
      %p100 = por %p98, %p99
      %s101 = ssub.s32 %s25, %s44
      %s102 = ssub.s32 %s27, %s36
      %s103 = sor.u32 %s101, %s102
      %p104 = scmp.eq.s32.totalorder %s103, 0
      %s106 = sadd.s32 %s105, 1
      %s107 = scalar_select %p104, %s105, %s106
      %p110 = pneg %p104
      %p111 = scmp.eq.s32.totalorder %s18, 3
      %p112 = por %p110, %p111
      %p113 = scmp.ne.s32.totalorder %s105, %s108
      %p114 = scmp.eq.s32.totalorder %s18, 0
      %p115 = por %p113, %p114
      %p116 = scmp.ne.s32.totalorder %s105, %s108
      %p117 = scmp.eq.s32.totalorder %s23, 3
      %p118 = por %p116, %p117
      %p119 = scmp.ne.s32.totalorder %s108, %s109
      %p120 = scmp.eq.s32.totalorder %s23, 0
      %p121 = por %p119, %p120
      %p122 = scmp.ne.s32.totalorder %s108, %s109
      %p123 = scmp.eq.s32.totalorder %s24, 3
      %p124 = por %p122, %p123
      %p126 = scmp.ne.s32.totalorder %s109, %s125
      %p127 = scmp.eq.s32.totalorder %s24, 0
      %p128 = por %p126, %p127
      %s129 = ssub.s32 %s25, %s44
      %s130 = ssub.s32 %s26, %s40
      %s131 = sor.u32 %s129, %s130
      %p132 = scmp.eq.s32.totalorder %s131, 0
      %s134 = sadd.s32 %s133, 1
      %s135 = scalar_select %p132, %s133, %s134
      %p138 = pneg %p132
      %p139 = scmp.eq.s32.totalorder %s18, 3
      %p140 = por %p138, %p139
      %p141 = scmp.ne.s32.totalorder %s133, %s136
      %p142 = scmp.eq.s32.totalorder %s18, 0
      %p143 = por %p141, %p142
      %p144 = scmp.ne.s32.totalorder %s133, %s136
      %p145 = scmp.eq.s32.totalorder %s23, 3
      %p146 = por %p144, %p145
      %p147 = scmp.ne.s32.totalorder %s136, %s137
      %p148 = scmp.eq.s32.totalorder %s23, 0
      %p149 = por %p147, %p148
      %p150 = scmp.ne.s32.totalorder %s136, %s137
      %p151 = scmp.eq.s32.totalorder %s24, 3
      %p152 = por %p150, %p151
      %p154 = scmp.ne.s32.totalorder %s137, %s153
      %p155 = scmp.eq.s32.totalorder %s24, 0
      %p156 = por %p154, %p155
      %p157 = scmp.le.s32.totalorder 1, %s18
      %p158 = scmp.lt.s32.totalorder %s18, 5
      %p159 = pnand %p157, %p158
      %p160 = pneg %p159
      // Predicated region
      $region9: #{tpu_custom_call.1} parent=5 // pred_check
        _
      $region10: #{tpu_custom_call.1} parent=5 // pred_check_branch
        %162 = sbr.rel (%p159) target = $region12
      $region11: #{tpu_custom_call.1} parent=5 // pred_region
        %s163 = ssub.s32 %s18, 1
      $region12: #{tpu_custom_call.1} parent=5 // pred_fallthru
        _
      %p164 = scmp.lt.s32.totalorder %s18, 4
      // Predicated region
      $region13: #{tpu_custom_call.1} parent=5 // pred_check
        %p165 = pneg %p164
      $region14: #{tpu_custom_call.1} parent=5 // pred_check_branch
        %167 = sbr.rel (%p165) target = $region16
      $region15: #{tpu_custom_call.1} parent=5 // pred_region
        // Predicated region
        $region17: #{tpu_custom_call.1} parent=15 // pred_check
          %p168 = pneg %p59
        $region18: #{tpu_custom_call.1} parent=15 // pred_check_branch
          %170 = sbr.rel (%p168) target = $region20
        $region19: #{tpu_custom_call.1} parent=15 // pred_region
          %s171 = sand.u32 %s49, 1
          %s172 = scalar_lea.sflag [#allocation7], %s171
          %s173 = sand.u32 %s49, 1
          %s174 = smul.addr %s173, 128
          %s175 = scalar_lea.vmem [#allocation6], %s174
          %s176 = smul.u32 2, %s26
          %s178 = ssub.s32 2048, 2048
          %179 = vsyncadd %s172, %s178
          %s180 = smul.addr %s25, 48
          %s181 = sadd.s32 %s176, %s180
          %s182 = smul.addr %s181, 128
          %s183 = scalar_lea.hbm %s0, %s182
          %s184 = sshll.u32 %s175, 4
          %s185 = int_to_ptr.vmem [resolvable:$true] %s184
          %190 = dma.hbm_to_vmem [thread:$0]  %s183, 2048, %s185, %s172, 256, 256, 16
        $region20: #{tpu_custom_call.1} parent=15 // pred_fallthru
          _
        // Predicated region
        $region21: #{tpu_custom_call.1} parent=15 // pred_check
          %p191 = pneg %p87
        $region22: #{tpu_custom_call.1} parent=15 // pred_check_branch
          %193 = sbr.rel (%p191) target = $region24
        $region23: #{tpu_custom_call.1} parent=15 // pred_region
          %s194 = sand.u32 %s18, 1
          %s195 = scalar_lea.sflag [#allocation10], %s194
          %s196 = sand.u32 %s77, 1
          %s197 = smul.addr %s196, 64
          %s198 = scalar_lea.vmem [#allocation9], %s197
          %s200 = ssub.s32 1024, 1024
          %201 = vsyncadd %s195, %s200
          %s202 = sadd.s32 %s27, 16
          %s203 = smul.addr %s25, 48
          %s204 = sadd.s32 %s202, %s203
          %s205 = smul.addr %s204, 128
          %s206 = scalar_lea.hbm %s1, %s205
          %s207 = sshll.u32 %s198, 4
          %s208 = int_to_ptr.vmem [resolvable:$true] %s207
          %213 = dma.hbm_to_vmem [thread:$0]  %s206, 1024, %s208, %s195, 256, 128, 8
        $region24: #{tpu_custom_call.1} parent=15 // pred_fallthru
          _
        // Predicated region
        $region25: #{tpu_custom_call.1} parent=15 // pred_check
          %p214 = pneg %p115
        $region26: #{tpu_custom_call.1} parent=15 // pred_check_branch
          %216 = sbr.rel (%p214) target = $region28
        $region27: #{tpu_custom_call.1} parent=15 // pred_region
          %s217 = sand.u32 %s18, 1
          %s218 = scalar_lea.sflag [#allocation10], %s217
          %s219 = sand.u32 %s105, 1
          %s220 = smul.addr %s219, 64
          %s221 = scalar_lea.vmem [#allocation11], %s220
          %s223 = ssub.s32 1024, 1024
          %224 = vsyncadd %s218, %s223
          %s225 = sadd.s32 %s27, 32
          %s226 = smul.addr %s25, 48
          %s227 = sadd.s32 %s225, %s226
          %s228 = smul.addr %s227, 128
          %s229 = scalar_lea.hbm %s2, %s228
          %s230 = sshll.u32 %s221, 4
          %s231 = int_to_ptr.vmem [resolvable:$true] %s230
          %236 = dma.hbm_to_vmem [thread:$0]  %s229, 1024, %s231, %s218, 256, 128, 8
        $region28: #{tpu_custom_call.1} parent=15 // pred_fallthru
          _
      $region16: #{tpu_custom_call.1} parent=5 // pred_fallthru
        _
      %p237 = scmp.le.s32.totalorder 1, %s18
      %p238 = scmp.lt.s32.totalorder %s18, 5
      %p239 = pnand %p237, %p238
      %p240 = pneg %p239
      // Predicated region
      $region29: #{tpu_custom_call.1} parent=5 // pred_check
        _
      $region30: #{tpu_custom_call.1} parent=5 // pred_check_branch
        %242 = sbr.rel (%p239) target = $region32
      $region31: #{tpu_custom_call.1} parent=5 // pred_region
        %s243 = ssub.s32 %s18, 1
        %s244 = sand.u32 %s52, 1
        %s245 = scalar_lea.sflag [#allocation7], %s244
        %s246 = sand.u32 %s52, 1
        %s247 = smul.addr %s246, 128
        %s248 = scalar_lea.vmem [#allocation6], %s247
        // Predicated region
        $region33: #{tpu_custom_call.1} parent=31 // pred_check
          %p249 = pneg %p65
        $region34: #{tpu_custom_call.1} parent=31 // pred_check_branch
          %251 = sbr.rel (%p249) target = $region36
        $region35: #{tpu_custom_call.1} parent=31 // pred_region
          %252 = dma.done %s245, 2048
        $region36: #{tpu_custom_call.1} parent=31 // pred_fallthru
          _
        %s253 = sand.u32 %s23, 1
        %s254 = scalar_lea.sflag [#allocation10], %s253
        %s255 = sand.u32 %s80, 1
        %s256 = smul.addr %s255, 64
        %s257 = scalar_lea.vmem [#allocation9], %s256
        // Predicated region
        $region37: #{tpu_custom_call.1} parent=31 // pred_check
          %p258 = pneg %p93
        $region38: #{tpu_custom_call.1} parent=31 // pred_check_branch
          %260 = sbr.rel (%p258) target = $region40
        $region39: #{tpu_custom_call.1} parent=31 // pred_region
          %261 = dma.done %s254, 1024
        $region40: #{tpu_custom_call.1} parent=31 // pred_fallthru
          _
        %s262 = sand.u32 %s23, 1
        %s263 = scalar_lea.sflag [#allocation10], %s262
        %s264 = sand.u32 %s108, 1
        %s265 = smul.addr %s264, 64
        %s266 = scalar_lea.vmem [#allocation11], %s265
        // Predicated region
        $region41: #{tpu_custom_call.1} parent=31 // pred_check
          %p267 = pneg %p121
        $region42: #{tpu_custom_call.1} parent=31 // pred_check_branch
          %269 = sbr.rel (%p267) target = $region44
        $region43: #{tpu_custom_call.1} parent=31 // pred_region
          %270 = dma.done %s263, 1024
        $region44: #{tpu_custom_call.1} parent=31 // pred_fallthru
          _
        %s271 = sand.u32 %s52, 1
        %s272 = scalar_lea.sflag [#allocation7], %s271
        %s273 = sand.u32 %s52, 1
        %s274 = smul.addr %s273, 128
        %s275 = scalar_lea.vmem [#allocation6], %s274
        %p276 = pneg %p65
        %p277 = pneg %p62
        %s278 = sand.u32 %s23, 1
        %s279 = scalar_lea.sflag [#allocation10], %s278
        %s280 = sand.u32 %s80, 1
        %s281 = smul.addr %s280, 64
        %s282 = scalar_lea.vmem [#allocation9], %s281
        %p283 = pneg %p93
        %p284 = pneg %p90
        %s285 = sand.u32 %s23, 1
        %s286 = scalar_lea.sflag [#allocation10], %s285
        %s287 = sand.u32 %s108, 1
        %s288 = smul.addr %s287, 64
        %s289 = scalar_lea.vmem [#allocation11], %s288
        %p290 = pneg %p121
        %p291 = pneg %p118
        %p292 = pneg %p149
        %p293 = pneg %p146
        %s294 = sand.u32 %s136, 1
        %s295 = scalar_lea.sflag [#allocation8], %s294
        %s296 = sand.u32 %s136, 1
        %s297 = smul.addr %s296, 128
        %s298 = scalar_lea.vmem [#allocation12], %s297
        %s299 = smul.u32 2, %s29
        %s300 = smul.u32 2, %s29
        %p301 = scmp.eq.s32.totalorder %s30, 0
        // Predicated region
        $region45: #{tpu_custom_call.1} parent=31 // pred_check
          %p302 = pneg %p301
        $region46: #{tpu_custom_call.1} parent=31 // pred_check_branch
          %304 = sbr.rel (%p302) target = $region48
        $region47: #{tpu_custom_call.1} parent=31 // pred_region
          %v305 = vld [vmem:[%s248] sm:$0xff]
          %v306 = vld [vmem:[%s248 + $0x8] sm:$0xff]
          %v307 = vld [vmem:[%s248 + $0x10] sm:$0xff]
          %v308 = vld [vmem:[%s248 + $0x18] sm:$0xff]
          %v309 = vld [vmem:[%s248 + $0x20] sm:$0xff]
          %v310 = vld [vmem:[%s248 + $0x28] sm:$0xff]
          %v311 = vld [vmem:[%s248 + $0x30] sm:$0xff]
          %v312 = vld [vmem:[%s248 + $0x38] sm:$0xff]
          %v313 = vld [vmem:[%s248 + $0x40] sm:$0xff]
          %v314 = vld [vmem:[%s248 + $0x48] sm:$0xff]
          %v315 = vld [vmem:[%s248 + $0x50] sm:$0xff]
          %v316 = vld [vmem:[%s248 + $0x58] sm:$0xff]
          %v317 = vld [vmem:[%s248 + $0x60] sm:$0xff]
          %v318 = vld [vmem:[%s248 + $0x68] sm:$0xff]
          %v319 = vld [vmem:[%s248 + $0x70] sm:$0xff]
          %v320 = vld [vmem:[%s248 + $0x78] sm:$0xff]
          %v321 = vmul.f32 %v305, 0.125
          %v322 = vmul.f32 %v306, 0.125
          %v323 = vmul.f32 %v307, 0.125
          %v324 = vmul.f32 %v308, 0.125
          %v325 = vmul.f32 %v309, 0.125
          %v326 = vmul.f32 %v310, 0.125
          %v327 = vmul.f32 %v311, 0.125
          %v328 = vmul.f32 %v312, 0.125
          %v329 = vmul.f32 %v313, 0.125
          %v330 = vmul.f32 %v314, 0.125
          %v331 = vmul.f32 %v315, 0.125
          %v332 = vmul.f32 %v316, 0.125
          %v333 = vmul.f32 %v317, 0.125
          %v334 = vmul.f32 %v318, 0.125
          %v335 = vmul.f32 %v319, 0.125
          %v336 = vmul.f32 %v320, 0.125
          %337 = vst [vmem:[#allocation2] sm:$0xff] %v321
          %338 = vst [vmem:[#allocation2 + $0x8] sm:$0xff] %v322
          %339 = vst [vmem:[#allocation2 + $0x10] sm:$0xff] %v323
          %340 = vst [vmem:[#allocation2 + $0x18] sm:$0xff] %v324
          %341 = vst [vmem:[#allocation2 + $0x20] sm:$0xff] %v325
          %342 = vst [vmem:[#allocation2 + $0x28] sm:$0xff] %v326
          %343 = vst [vmem:[#allocation2 + $0x30] sm:$0xff] %v327
          %344 = vst [vmem:[#allocation2 + $0x38] sm:$0xff] %v328
          %345 = vst [vmem:[#allocation2 + $0x40] sm:$0xff] %v329
          %346 = vst [vmem:[#allocation2 + $0x48] sm:$0xff] %v330
          %347 = vst [vmem:[#allocation2 + $0x50] sm:$0xff] %v331
          %348 = vst [vmem:[#allocation2 + $0x58] sm:$0xff] %v332
          %349 = vst [vmem:[#allocation2 + $0x60] sm:$0xff] %v333
          %350 = vst [vmem:[#allocation2 + $0x68] sm:$0xff] %v334
          %351 = vst [vmem:[#allocation2 + $0x70] sm:$0xff] %v335
          %352 = vst [vmem:[#allocation2 + $0x78] sm:$0xff] %v336
          %vm353 = vcmask 7168
          %354 = vst.msk [vmem:[#allocation3] sm:$0xff] %vm353, -inf
          %355 = vst.msk [vmem:[#allocation3 + $0x8] sm:$0xff] %vm353, -inf
          %356 = vst.msk [vmem:[#allocation3 + $0x10] sm:$0xff] %vm353, -inf
          %357 = vst.msk [vmem:[#allocation3 + $0x18] sm:$0xff] %vm353, -inf
          %358 = vst.msk [vmem:[#allocation3 + $0x20] sm:$0xff] %vm353, -inf
          %359 = vst.msk [vmem:[#allocation3 + $0x28] sm:$0xff] %vm353, -inf
          %360 = vst.msk [vmem:[#allocation3 + $0x30] sm:$0xff] %vm353, -inf
          %361 = vst.msk [vmem:[#allocation3 + $0x38] sm:$0xff] %vm353, -inf
          %362 = vst.msk [vmem:[#allocation3 + $0x40] sm:$0xff] %vm353, -inf
          %363 = vst.msk [vmem:[#allocation3 + $0x48] sm:$0xff] %vm353, -inf
          %364 = vst.msk [vmem:[#allocation3 + $0x50] sm:$0xff] %vm353, -inf
          %365 = vst.msk [vmem:[#allocation3 + $0x58] sm:$0xff] %vm353, -inf
          %366 = vst.msk [vmem:[#allocation3 + $0x60] sm:$0xff] %vm353, -inf
          %367 = vst.msk [vmem:[#allocation3 + $0x68] sm:$0xff] %vm353, -inf
          %368 = vst.msk [vmem:[#allocation3 + $0x70] sm:$0xff] %vm353, -inf
          %369 = vst.msk [vmem:[#allocation3 + $0x78] sm:$0xff] %vm353, -inf
          %370 = vst.msk [vmem:[#allocation3 + $0x80] sm:$0xff] %vm353, -inf
          %371 = vst.msk [vmem:[#allocation3 + $0x88] sm:$0xff] %vm353, -inf
          %372 = vst.msk [vmem:[#allocation3 + $0x90] sm:$0xff] %vm353, -inf
          %373 = vst.msk [vmem:[#allocation3 + $0x98] sm:$0xff] %vm353, -inf
          %374 = vst.msk [vmem:[#allocation3 + $0xa0] sm:$0xff] %vm353, -inf
          %375 = vst.msk [vmem:[#allocation3 + $0xa8] sm:$0xff] %vm353, -inf
          %376 = vst.msk [vmem:[#allocation3 + $0xb0] sm:$0xff] %vm353, -inf
          %377 = vst.msk [vmem:[#allocation3 + $0xb8] sm:$0xff] %vm353, -inf
          %378 = vst.msk [vmem:[#allocation3 + $0xc0] sm:$0xff] %vm353, -inf
          %379 = vst.msk [vmem:[#allocation3 + $0xc8] sm:$0xff] %vm353, -inf
          %380 = vst.msk [vmem:[#allocation3 + $0xd0] sm:$0xff] %vm353, -inf
          %381 = vst.msk [vmem:[#allocation3 + $0xd8] sm:$0xff] %vm353, -inf
          %382 = vst.msk [vmem:[#allocation3 + $0xe0] sm:$0xff] %vm353, -inf
          %383 = vst.msk [vmem:[#allocation3 + $0xe8] sm:$0xff] %vm353, -inf
          %384 = vst.msk [vmem:[#allocation3 + $0xf0] sm:$0xff] %vm353, -inf
          %385 = vst.msk [vmem:[#allocation3 + $0xf8] sm:$0xff] %vm353, -inf
          %386 = vst.msk [vmem:[#allocation4] sm:$0xff] %vm353, 0.0
          %387 = vst.msk [vmem:[#allocation4 + $0x8] sm:$0xff] %vm353, 0.0
          %388 = vst.msk [vmem:[#allocation4 + $0x10] sm:$0xff] %vm353, 0.0
          %389 = vst.msk [vmem:[#allocation4 + $0x18] sm:$0xff] %vm353, 0.0
          %390 = vst.msk [vmem:[#allocation4 + $0x20] sm:$0xff] %vm353, 0.0
          %391 = vst.msk [vmem:[#allocation4 + $0x28] sm:$0xff] %vm353, 0.0
          %392 = vst.msk [vmem:[#allocation4 + $0x30] sm:$0xff] %vm353, 0.0
          %393 = vst.msk [vmem:[#allocation4 + $0x38] sm:$0xff] %vm353, 0.0
          %394 = vst.msk [vmem:[#allocation4 + $0x40] sm:$0xff] %vm353, 0.0
          %395 = vst.msk [vmem:[#allocation4 + $0x48] sm:$0xff] %vm353, 0.0
          %396 = vst.msk [vmem:[#allocation4 + $0x50] sm:$0xff] %vm353, 0.0
          %397 = vst.msk [vmem:[#allocation4 + $0x58] sm:$0xff] %vm353, 0.0
          %398 = vst.msk [vmem:[#allocation4 + $0x60] sm:$0xff] %vm353, 0.0
          %399 = vst.msk [vmem:[#allocation4 + $0x68] sm:$0xff] %vm353, 0.0
          %400 = vst.msk [vmem:[#allocation4 + $0x70] sm:$0xff] %vm353, 0.0
          %401 = vst.msk [vmem:[#allocation4 + $0x78] sm:$0xff] %vm353, 0.0
          %402 = vst.msk [vmem:[#allocation4 + $0x80] sm:$0xff] %vm353, 0.0
          %403 = vst.msk [vmem:[#allocation4 + $0x88] sm:$0xff] %vm353, 0.0
          %404 = vst.msk [vmem:[#allocation4 + $0x90] sm:$0xff] %vm353, 0.0
          %405 = vst.msk [vmem:[#allocation4 + $0x98] sm:$0xff] %vm353, 0.0
          %406 = vst.msk [vmem:[#allocation4 + $0xa0] sm:$0xff] %vm353, 0.0
          %407 = vst.msk [vmem:[#allocation4 + $0xa8] sm:$0xff] %vm353, 0.0
          %408 = vst.msk [vmem:[#allocation4 + $0xb0] sm:$0xff] %vm353, 0.0
          %409 = vst.msk [vmem:[#allocation4 + $0xb8] sm:$0xff] %vm353, 0.0
          %410 = vst.msk [vmem:[#allocation4 + $0xc0] sm:$0xff] %vm353, 0.0
          %411 = vst.msk [vmem:[#allocation4 + $0xc8] sm:$0xff] %vm353, 0.0
          %412 = vst.msk [vmem:[#allocation4 + $0xd0] sm:$0xff] %vm353, 0.0
          %413 = vst.msk [vmem:[#allocation4 + $0xd8] sm:$0xff] %vm353, 0.0
          %414 = vst.msk [vmem:[#allocation4 + $0xe0] sm:$0xff] %vm353, 0.0
          %415 = vst.msk [vmem:[#allocation4 + $0xe8] sm:$0xff] %vm353, 0.0
          %416 = vst.msk [vmem:[#allocation4 + $0xf0] sm:$0xff] %vm353, 0.0
          %417 = vst.msk [vmem:[#allocation4 + $0xf8] sm:$0xff] %vm353, 0.0
          %vm418 = vcmask 523264
          %419 = vst.msk [vmem:[#allocation5] sm:$0xff] %vm418, 0.0
          %420 = vst.msk [vmem:[#allocation5 + $0x8] sm:$0xff] %vm418, 0.0
          %421 = vst.msk [vmem:[#allocation5 + $0x10] sm:$0xff] %vm418, 0.0
          %422 = vst.msk [vmem:[#allocation5 + $0x18] sm:$0xff] %vm418, 0.0
          %423 = vst.msk [vmem:[#allocation5 + $0x20] sm:$0xff] %vm418, 0.0
          %424 = vst.msk [vmem:[#allocation5 + $0x28] sm:$0xff] %vm418, 0.0
          %425 = vst.msk [vmem:[#allocation5 + $0x30] sm:$0xff] %vm418, 0.0
          %426 = vst.msk [vmem:[#allocation5 + $0x38] sm:$0xff] %vm418, 0.0
          %427 = vst.msk [vmem:[#allocation5 + $0x40] sm:$0xff] %vm418, 0.0
          %428 = vst.msk [vmem:[#allocation5 + $0x48] sm:$0xff] %vm418, 0.0
          %429 = vst.msk [vmem:[#allocation5 + $0x50] sm:$0xff] %vm418, 0.0
          %430 = vst.msk [vmem:[#allocation5 + $0x58] sm:$0xff] %vm418, 0.0
          %431 = vst.msk [vmem:[#allocation5 + $0x60] sm:$0xff] %vm418, 0.0
          %432 = vst.msk [vmem:[#allocation5 + $0x68] sm:$0xff] %vm418, 0.0
          %433 = vst.msk [vmem:[#allocation5 + $0x70] sm:$0xff] %vm418, 0.0
          %434 = vst.msk [vmem:[#allocation5 + $0x78] sm:$0xff] %vm418, 0.0
          %435 = vst.msk [vmem:[#allocation5 + $0x80] sm:$0xff] %vm418, 0.0
          %436 = vst.msk [vmem:[#allocation5 + $0x88] sm:$0xff] %vm418, 0.0
          %437 = vst.msk [vmem:[#allocation5 + $0x90] sm:$0xff] %vm418, 0.0
          %438 = vst.msk [vmem:[#allocation5 + $0x98] sm:$0xff] %vm418, 0.0
          %439 = vst.msk [vmem:[#allocation5 + $0xa0] sm:$0xff] %vm418, 0.0
          %440 = vst.msk [vmem:[#allocation5 + $0xa8] sm:$0xff] %vm418, 0.0
          %441 = vst.msk [vmem:[#allocation5 + $0xb0] sm:$0xff] %vm418, 0.0
          %442 = vst.msk [vmem:[#allocation5 + $0xb8] sm:$0xff] %vm418, 0.0
          %443 = vst.msk [vmem:[#allocation5 + $0xc0] sm:$0xff] %vm418, 0.0
          %444 = vst.msk [vmem:[#allocation5 + $0xc8] sm:$0xff] %vm418, 0.0
          %445 = vst.msk [vmem:[#allocation5 + $0xd0] sm:$0xff] %vm418, 0.0
          %446 = vst.msk [vmem:[#allocation5 + $0xd8] sm:$0xff] %vm418, 0.0
          %447 = vst.msk [vmem:[#allocation5 + $0xe0] sm:$0xff] %vm418, 0.0
          %448 = vst.msk [vmem:[#allocation5 + $0xe8] sm:$0xff] %vm418, 0.0
          %449 = vst.msk [vmem:[#allocation5 + $0xf0] sm:$0xff] %vm418, 0.0
          %450 = vst.msk [vmem:[#allocation5 + $0xf8] sm:$0xff] %vm418, 0.0
        $region48: #{tpu_custom_call.1} parent=31 // pred_fallthru
          _
        %v451 = vld [vmem:[%s257] sm:$0xff]
        %v452 = vld [vmem:[%s257 + $0x8] sm:$0xff]
        %v453 = vld [vmem:[%s257 + $0x10] sm:$0xff]
        %v454 = vld [vmem:[%s257 + $0x18] sm:$0xff]
        %v455 = vld [vmem:[%s257 + $0x20] sm:$0xff]
        %v456 = vld [vmem:[%s257 + $0x28] sm:$0xff]
        %v457 = vld [vmem:[%s257 + $0x30] sm:$0xff]
        %v458 = vld [vmem:[%s257 + $0x38] sm:$0xff]
        %v459 = vld [vmem:[%s266] sm:$0xff]
        %v460 = vld [vmem:[%s266 + $0x8] sm:$0xff]
        %v461 = vld [vmem:[%s266 + $0x10] sm:$0xff]
        %v462 = vld [vmem:[%s266 + $0x18] sm:$0xff]
        %v463 = vld [vmem:[%s266 + $0x20] sm:$0xff]
        %v464 = vld [vmem:[%s266 + $0x28] sm:$0xff]
        %v465 = vld [vmem:[%s266 + $0x30] sm:$0xff]
        %v466 = vld [vmem:[%s266 + $0x38] sm:$0xff]
        %v467 = vld [vmem:[#allocation2] sm:$0xff]
        %v468 = vld [vmem:[#allocation2 + $0x8] sm:$0xff]
        %v469 = vld [vmem:[#allocation2 + $0x10] sm:$0xff]
        %v470 = vld [vmem:[#allocation2 + $0x18] sm:$0xff]
        %v471 = vld [vmem:[#allocation2 + $0x20] sm:$0xff]
        %v472 = vld [vmem:[#allocation2 + $0x28] sm:$0xff]
        %v473 = vld [vmem:[#allocation2 + $0x30] sm:$0xff]
        %v474 = vld [vmem:[#allocation2 + $0x38] sm:$0xff]
        %v475 = vld [vmem:[#allocation2 + $0x40] sm:$0xff]
        %v476 = vld [vmem:[#allocation2 + $0x48] sm:$0xff]
        %v477 = vld [vmem:[#allocation2 + $0x50] sm:$0xff]
        %v478 = vld [vmem:[#allocation2 + $0x58] sm:$0xff]
        %v479 = vld [vmem:[#allocation2 + $0x60] sm:$0xff]
        %v480 = vld [vmem:[#allocation2 + $0x68] sm:$0xff]
        %v481 = vld [vmem:[#allocation2 + $0x70] sm:$0xff]
        %v482 = vld [vmem:[#allocation2 + $0x78] sm:$0xff]
        %483 = vxpose.xlu0.b32.start [1/16] %v467, 128
        %484 = vxpose.xlu0.b32.cont [2/16] %v469, 128
        %485 = vxpose.xlu0.b32.cont [3/16] %v471, 128
        %486 = vxpose.xlu0.b32.cont [4/16] %v473, 128
        %487 = vxpose.xlu0.b32.cont [5/16] %v475, 128
        %488 = vxpose.xlu0.b32.cont [6/16] %v477, 128
        %489 = vxpose.xlu0.b32.cont [7/16] %v479, 128
        %490 = vxpose.xlu0.b32.cont [8/16] %v481, 128
        %491 = vxpose.xlu0.b32.cont [9/16] 0.0, 128
        %492 = vxpose.xlu0.b32.cont [10/16] 0.0, 128
        %493 = vxpose.xlu0.b32.cont [11/16] 0.0, 128
        %494 = vxpose.xlu0.b32.cont [12/16] 0.0, 128
        %495 = vxpose.xlu0.b32.cont [13/16] 0.0, 128
        %496 = vxpose.xlu0.b32.cont [14/16] 0.0, 128
        %497 = vxpose.xlu0.b32.cont [15/16] 0.0, 128
        %498 = vxpose.xlu0.b32.end [16/16] 0.0, 128
        %v499 = vpop.trf.xlu0
        %v500 = vpop.trf.xlu0
        %v501 = vpop.trf.xlu0
        %v502 = vpop.trf.xlu0
        %v503 = vpop.trf.xlu0
        %v504 = vpop.trf.xlu0
        %v505 = vpop.trf.xlu0
        %v506 = vpop.trf.xlu0
        %v507 = vpop.trf.xlu0
        %v508 = vpop.trf.xlu0
        %v509 = vpop.trf.xlu0
        %v510 = vpop.trf.xlu0
        %v511 = vpop.trf.xlu0
        %v512 = vpop.trf.xlu0
        %v513 = vpop.trf.xlu0
        %v514 = vpop.trf.xlu0
        %515 = vxpose.xlu0.b32.start [1/16] %v468, 128
        %516 = vxpose.xlu0.b32.cont [2/16] %v470, 128
        %517 = vxpose.xlu0.b32.cont [3/16] %v472, 128
        %518 = vxpose.xlu0.b32.cont [4/16] %v474, 128
        %519 = vxpose.xlu0.b32.cont [5/16] %v476, 128
        %520 = vxpose.xlu0.b32.cont [6/16] %v478, 128
        %521 = vxpose.xlu0.b32.cont [7/16] %v480, 128
        %522 = vxpose.xlu0.b32.cont [8/16] %v482, 128
        %523 = vxpose.xlu0.b32.cont [9/16] 0.0, 128
        %524 = vxpose.xlu0.b32.cont [10/16] 0.0, 128
        %525 = vxpose.xlu0.b32.cont [11/16] 0.0, 128
        %526 = vxpose.xlu0.b32.cont [12/16] 0.0, 128
        %527 = vxpose.xlu0.b32.cont [13/16] 0.0, 128
        %528 = vxpose.xlu0.b32.cont [14/16] 0.0, 128
        %529 = vxpose.xlu0.b32.cont [15/16] 0.0, 128
        %530 = vxpose.xlu0.b32.end [16/16] 0.0, 128
        %v531 = vpop.trf.xlu0
        %v532 = vpop.trf.xlu0
        %v533 = vpop.trf.xlu0
        %v534 = vpop.trf.xlu0
        %v535 = vpop.trf.xlu0
        %v536 = vpop.trf.xlu0
        %v537 = vpop.trf.xlu0
        %v538 = vpop.trf.xlu0
        %v539 = vpop.trf.xlu0
        %v540 = vpop.trf.xlu0
        %v541 = vpop.trf.xlu0
        %v542 = vpop.trf.xlu0
        %v543 = vpop.trf.xlu0
        %v544 = vpop.trf.xlu0
        %v545 = vpop.trf.xlu0
        %v546 = vpop.trf.xlu0
        %vm547 = vcmask 523264
        %v549 = vsel %vm547, %v499, 0
        %v552 = vsel %vm547, %v500, 0
        %v555 = vsel %vm547, %v501, 0
        %v558 = vsel %vm547, %v502, 0
        %v561 = vsel %vm547, %v503, 0
        %v564 = vsel %vm547, %v504, 0
        %v567 = vsel %vm547, %v505, 0
        %v570 = vsel %vm547, %v506, 0
        %v573 = vsel %vm547, %v507, 0
        %v576 = vsel %vm547, %v508, 0
        %v579 = vsel %vm547, %v509, 0
        %v582 = vsel %vm547, %v510, 0
        %v585 = vsel %vm547, %v511, 0
        %v588 = vsel %vm547, %v512, 0
        %v591 = vsel %vm547, %v513, 0
        %v594 = vsel %vm547, %v514, 0
        %v597 = vsel %vm547, %v531, 0
        %v600 = vsel %vm547, %v532, 0
        %v603 = vsel %vm547, %v533, 0
        %v606 = vsel %vm547, %v534, 0
        %v609 = vsel %vm547, %v535, 0
        %v612 = vsel %vm547, %v536, 0
        %v615 = vsel %vm547, %v537, 0
        %v618 = vsel %vm547, %v538, 0
        %v621 = vsel %vm547, %v539, 0
        %v624 = vsel %vm547, %v540, 0
        %v627 = vsel %vm547, %v541, 0
        %v630 = vsel %vm547, %v542, 0
        %v633 = vsel %vm547, %v543, 0
        %v636 = vsel %vm547, %v544, 0
        %v639 = vsel %vm547, %v545, 0
        %v642 = vsel %vm547, %v546, 0
        %644 = vmatprep.subr.mxu0 0.0
        %645 = vmatpush1.msra.mxu0 0.0
        %646 = vmatprep.subr.mxu0 0.0
        %647 = vmatpush1.msra.mxu0 0.0
        %648 = vmatprep.subr.mxu0 0.0
        %649 = vmatpush1.msra.mxu0 0.0
        %650 = vmatprep.subr.mxu0 0.0
        %651 = vmatpush1.msra.mxu0 0.0
        %652 = vmatprep.subr.mxu0 0.0
        %653 = vmatpush1.msra.mxu0 0.0
        %654 = vmatprep.subr.mxu0 0.0
        %655 = vmatpush1.msra.mxu0 0.0
        %656 = vmatprep.subr.mxu0 0.0
        %657 = vmatpush1.msra.mxu0 0.0
        %658 = vmatprep.subr.mxu0 0.0
        %659 = vmatpush1.msra.mxu0 0.0
        %660 = vmatprep.subr.mxu0 0.0
        %661 = vmatpush1.msra.mxu0 %v458
        %662 = vmatprep.subr.mxu0 0.0
        %663 = vmatpush1.msra.mxu0 %v457
        %664 = vmatprep.subr.mxu0 0.0
        %665 = vmatpush1.msra.mxu0 %v456
        %666 = vmatprep.subr.mxu0 0.0
        %667 = vmatpush1.msra.mxu0 %v455
        %668 = vmatprep.subr.mxu0 0.0
        %669 = vmatpush1.msra.mxu0 %v454
        %670 = vmatprep.subr.mxu0 0.0
        %671 = vmatpush1.msra.mxu0 %v453
        %672 = vmatprep.subr.mxu0 0.0
        %673 = vmatpush1.msra.mxu0 %v452
        %674 = vmatprep.subr.mxu0 0.0
        %675 = vmatpush1.msra.mxu0 %v451
        %676 = vmatprep.subr.mxu0 0.0
        %677 = vmatpush2.msra.mxu0 0.0
        %678 = vmatprep.subr.mxu0 0.0
        %679 = vmatpush2.msra.mxu0 0.0
        %680 = vmatprep.subr.mxu0 0.0
        %681 = vmatpush2.msra.mxu0 0.0
        %682 = vmatprep.subr.mxu0 0.0
        %683 = vmatpush2.msra.mxu0 0.0
        %684 = vmatprep.subr.mxu0 0.0
        %685 = vmatpush2.msra.mxu0 0.0
        %686 = vmatprep.subr.mxu0 0.0
        %687 = vmatpush2.msra.mxu0 0.0
        %688 = vmatprep.subr.mxu0 0.0
        %689 = vmatpush2.msra.mxu0 0.0
        %690 = vmatprep.subr.mxu0 0.0
        %691 = vmatpush2.msra.mxu0 0.0
        %692 = vmatprep.subr.mxu0 0.0
        %693 = vmatpush2.msra.mxu0 0.0
        %694 = vmatprep.subr.mxu0 0.0
        %695 = vmatpush2.msra.mxu0 0.0
        %696 = vmatprep.subr.mxu0 0.0
        %697 = vmatpush2.msra.mxu0 0.0
        %698 = vmatprep.subr.mxu0 0.0
        %699 = vmatpush2.msra.mxu0 0.0
        %700 = vmatprep.subr.mxu0 0.0
        %701 = vmatpush2.msra.mxu0 0.0
        %702 = vmatprep.subr.mxu0 0.0
        %703 = vmatpush2.msra.mxu0 0.0
        %704 = vmatprep.subr.mxu0 0.0
        %705 = vmatpush2.msra.mxu0 0.0
        %706 = vmatprep.subr.mxu0 0.0
        %707 = vmatpush2.msra.mxu0 0.0
        %708 = vmatprep.mubr.f32.mxu0 0.0
        %709 = vmatmul.mubr.f32.gmra.mxu0 %v549
        %v710 = vpop.f32.mrf.mxu0
        %v711 = vadd.f32 0.0, %v710
        %v712 = vpop.f32.mrf.mxu0
        %713 = vmatprep.mubr.f32.mxu0 0.0
        %714 = vmatmul.mubr.f32.gmra.mxu0 %v552
        %v715 = vpop.f32.mrf.mxu0
        %v716 = vadd.f32 0.0, %v715
        %v717 = vpop.f32.mrf.mxu0
        %718 = vmatprep.mubr.f32.mxu0 0.0
        %719 = vmatmul.mubr.f32.gmra.mxu0 %v555
        %v720 = vpop.f32.mrf.mxu0
        %v721 = vadd.f32 0.0, %v720
        %v722 = vpop.f32.mrf.mxu0
        %723 = vmatprep.mubr.f32.mxu0 0.0
        %724 = vmatmul.mubr.f32.gmra.mxu0 %v558
        %v725 = vpop.f32.mrf.mxu0
        %v726 = vadd.f32 0.0, %v725
        %v727 = vpop.f32.mrf.mxu0
        %728 = vmatprep.mubr.f32.mxu0 0.0
        %729 = vmatmul.mubr.f32.gmra.mxu0 %v561
        %v730 = vpop.f32.mrf.mxu0
        %v731 = vadd.f32 0.0, %v730
        %v732 = vpop.f32.mrf.mxu0
        %733 = vmatprep.mubr.f32.mxu0 0.0
        %734 = vmatmul.mubr.f32.gmra.mxu0 %v564
        %v735 = vpop.f32.mrf.mxu0
        %v736 = vadd.f32 0.0, %v735
        %v737 = vpop.f32.mrf.mxu0
        %738 = vmatprep.mubr.f32.mxu0 0.0
        %739 = vmatmul.mubr.f32.gmra.mxu0 %v567
        %v740 = vpop.f32.mrf.mxu0
        %v741 = vadd.f32 0.0, %v740
        %v742 = vpop.f32.mrf.mxu0
        %743 = vmatprep.mubr.f32.mxu0 0.0
        %744 = vmatmul.mubr.f32.gmra.mxu0 %v570
        %v745 = vpop.f32.mrf.mxu0
        %v746 = vadd.f32 0.0, %v745
        %v747 = vpop.f32.mrf.mxu0
        %748 = vmatprep.mubr.f32.mxu0 0.0
        %749 = vmatmul.mubr.f32.gmra.mxu0 %v573
        %v750 = vpop.f32.mrf.mxu0
        %v751 = vadd.f32 0.0, %v750
        %v752 = vpop.f32.mrf.mxu0
        %753 = vmatprep.mubr.f32.mxu0 0.0
        %754 = vmatmul.mubr.f32.gmra.mxu0 %v576
        %v755 = vpop.f32.mrf.mxu0
        %v756 = vadd.f32 0.0, %v755
        %v757 = vpop.f32.mrf.mxu0
        %758 = vmatprep.mubr.f32.mxu0 0.0
        %759 = vmatmul.mubr.f32.gmra.mxu0 %v579
        %v760 = vpop.f32.mrf.mxu0
        %v761 = vadd.f32 0.0, %v760
        %v762 = vpop.f32.mrf.mxu0
        %763 = vmatprep.mubr.f32.mxu0 0.0
        %764 = vmatmul.mubr.f32.gmra.mxu0 %v582
        %v765 = vpop.f32.mrf.mxu0
        %v766 = vadd.f32 0.0, %v765
        %v767 = vpop.f32.mrf.mxu0
        %768 = vmatprep.mubr.f32.mxu0 0.0
        %769 = vmatmul.mubr.f32.gmra.mxu0 %v585
        %v770 = vpop.f32.mrf.mxu0
        %v771 = vadd.f32 0.0, %v770
        %v772 = vpop.f32.mrf.mxu0
        %773 = vmatprep.mubr.f32.mxu0 0.0
        %774 = vmatmul.mubr.f32.gmra.mxu0 %v588
        %v775 = vpop.f32.mrf.mxu0
        %v776 = vadd.f32 0.0, %v775
        %v777 = vpop.f32.mrf.mxu0
        %778 = vmatprep.mubr.f32.mxu0 0.0
        %779 = vmatmul.mubr.f32.gmra.mxu0 %v591
        %v780 = vpop.f32.mrf.mxu0
        %v781 = vadd.f32 0.0, %v780
        %v782 = vpop.f32.mrf.mxu0
        %783 = vmatprep.mubr.f32.mxu0 0.0
        %784 = vmatmul.mubr.f32.gmra.mxu0 %v594
        %v785 = vpop.f32.mrf.mxu0
        %v786 = vadd.f32 0.0, %v785
        %v787 = vpop.f32.mrf.mxu0
        %788 = vmatprep.mubr.f32.mxu0 0.0
        %789 = vmatmul.mubr.f32.gmra.mxu0 %v597
        %v790 = vpop.f32.mrf.mxu0
        %v791 = vadd.f32 0.0, %v790
        %v792 = vpop.f32.mrf.mxu0
        %793 = vmatprep.mubr.f32.mxu0 0.0
        %794 = vmatmul.mubr.f32.gmra.mxu0 %v600
        %v795 = vpop.f32.mrf.mxu0
        %v796 = vadd.f32 0.0, %v795
        %v797 = vpop.f32.mrf.mxu0
        %798 = vmatprep.mubr.f32.mxu0 0.0
        %799 = vmatmul.mubr.f32.gmra.mxu0 %v603
        %v800 = vpop.f32.mrf.mxu0
        %v801 = vadd.f32 0.0, %v800
        %v802 = vpop.f32.mrf.mxu0
        %803 = vmatprep.mubr.f32.mxu0 0.0
        %804 = vmatmul.mubr.f32.gmra.mxu0 %v606
        %v805 = vpop.f32.mrf.mxu0
        %v806 = vadd.f32 0.0, %v805
        %v807 = vpop.f32.mrf.mxu0
        %808 = vmatprep.mubr.f32.mxu0 0.0
        %809 = vmatmul.mubr.f32.gmra.mxu0 %v609
        %v810 = vpop.f32.mrf.mxu0
        %v811 = vadd.f32 0.0, %v810
        %v812 = vpop.f32.mrf.mxu0
        %813 = vmatprep.mubr.f32.mxu0 0.0
        %814 = vmatmul.mubr.f32.gmra.mxu0 %v612
        %v815 = vpop.f32.mrf.mxu0
        %v816 = vadd.f32 0.0, %v815
        %v817 = vpop.f32.mrf.mxu0
        %818 = vmatprep.mubr.f32.mxu0 0.0
        %819 = vmatmul.mubr.f32.gmra.mxu0 %v615
        %v820 = vpop.f32.mrf.mxu0
        %v821 = vadd.f32 0.0, %v820
        %v822 = vpop.f32.mrf.mxu0
        %823 = vmatprep.mubr.f32.mxu0 0.0
        %824 = vmatmul.mubr.f32.gmra.mxu0 %v618
        %v825 = vpop.f32.mrf.mxu0
        %v826 = vadd.f32 0.0, %v825
        %v827 = vpop.f32.mrf.mxu0
        %828 = vmatprep.mubr.f32.mxu0 0.0
        %829 = vmatmul.mubr.f32.gmra.mxu0 %v621
        %v830 = vpop.f32.mrf.mxu0
        %v831 = vadd.f32 0.0, %v830
        %v832 = vpop.f32.mrf.mxu0
        %833 = vmatprep.mubr.f32.mxu0 0.0
        %834 = vmatmul.mubr.f32.gmra.mxu0 %v624
        %v835 = vpop.f32.mrf.mxu0
        %v836 = vadd.f32 0.0, %v835
        %v837 = vpop.f32.mrf.mxu0
        %838 = vmatprep.mubr.f32.mxu0 0.0
        %839 = vmatmul.mubr.f32.gmra.mxu0 %v627
        %v840 = vpop.f32.mrf.mxu0
        %v841 = vadd.f32 0.0, %v840
        %v842 = vpop.f32.mrf.mxu0
        %843 = vmatprep.mubr.f32.mxu0 0.0
        %844 = vmatmul.mubr.f32.gmra.mxu0 %v630
        %v845 = vpop.f32.mrf.mxu0
        %v846 = vadd.f32 0.0, %v845
        %v847 = vpop.f32.mrf.mxu0
        %848 = vmatprep.mubr.f32.mxu0 0.0
        %849 = vmatmul.mubr.f32.gmra.mxu0 %v633
        %v850 = vpop.f32.mrf.mxu0
        %v851 = vadd.f32 0.0, %v850
        %v852 = vpop.f32.mrf.mxu0
        %853 = vmatprep.mubr.f32.mxu0 0.0
        %854 = vmatmul.mubr.f32.gmra.mxu0 %v636
        %v855 = vpop.f32.mrf.mxu0
        %v856 = vadd.f32 0.0, %v855
        %v857 = vpop.f32.mrf.mxu0
        %858 = vmatprep.mubr.f32.mxu0 0.0
        %859 = vmatmul.mubr.f32.gmra.mxu0 %v639
        %v860 = vpop.f32.mrf.mxu0
        %v861 = vadd.f32 0.0, %v860
        %v862 = vpop.f32.mrf.mxu0
        %863 = vmatprep.mubr.f32.mxu0 0.0
        %864 = vmatmul.mubr.f32.gmra.mxu0 %v642
        %v865 = vpop.f32.mrf.mxu0
        %v866 = vadd.f32 0.0, %v865
        %v867 = vpop.f32.mrf.mxu0
        %868 = vdwg.mxu0
        %v869 = vld [vmem:[#allocation3] sm:$0xff]
        %v870 = vld [vmem:[#allocation3 + $0x8] sm:$0xff]
        %v871 = vld [vmem:[#allocation3 + $0x10] sm:$0xff]
        %v872 = vld [vmem:[#allocation3 + $0x18] sm:$0xff]
        %v873 = vld [vmem:[#allocation3 + $0x20] sm:$0xff]
        %v874 = vld [vmem:[#allocation3 + $0x28] sm:$0xff]
        %v875 = vld [vmem:[#allocation3 + $0x30] sm:$0xff]
        %v876 = vld [vmem:[#allocation3 + $0x38] sm:$0xff]
        %v877 = vld [vmem:[#allocation3 + $0x40] sm:$0xff]
        %v878 = vld [vmem:[#allocation3 + $0x48] sm:$0xff]
        %v879 = vld [vmem:[#allocation3 + $0x50] sm:$0xff]
        %v880 = vld [vmem:[#allocation3 + $0x58] sm:$0xff]
        %v881 = vld [vmem:[#allocation3 + $0x60] sm:$0xff]
        %v882 = vld [vmem:[#allocation3 + $0x68] sm:$0xff]
        %v883 = vld [vmem:[#allocation3 + $0x70] sm:$0xff]
        %v884 = vld [vmem:[#allocation3 + $0x78] sm:$0xff]
        %v885 = vld [vmem:[#allocation3 + $0x80] sm:$0xff]
        %v886 = vld [vmem:[#allocation3 + $0x88] sm:$0xff]
        %v887 = vld [vmem:[#allocation3 + $0x90] sm:$0xff]
        %v888 = vld [vmem:[#allocation3 + $0x98] sm:$0xff]
        %v889 = vld [vmem:[#allocation3 + $0xa0] sm:$0xff]
        %v890 = vld [vmem:[#allocation3 + $0xa8] sm:$0xff]
        %v891 = vld [vmem:[#allocation3 + $0xb0] sm:$0xff]
        %v892 = vld [vmem:[#allocation3 + $0xb8] sm:$0xff]
        %v893 = vld [vmem:[#allocation3 + $0xc0] sm:$0xff]
        %v894 = vld [vmem:[#allocation3 + $0xc8] sm:$0xff]
        %v895 = vld [vmem:[#allocation3 + $0xd0] sm:$0xff]
        %v896 = vld [vmem:[#allocation3 + $0xd8] sm:$0xff]
        %v897 = vld [vmem:[#allocation3 + $0xe0] sm:$0xff]
        %v898 = vld [vmem:[#allocation3 + $0xe8] sm:$0xff]
        %v899 = vld [vmem:[#allocation3 + $0xf0] sm:$0xff]
        %v900 = vld [vmem:[#allocation3 + $0xf8] sm:$0xff]
        %901 = vmax.xlane.f32.xlu0 %v711
        %v902 = vpop.xlane.xlu0 %901
        %903 = vmax.xlane.f32.xlu0 %v716
        %v904 = vpop.xlane.xlu0 %903
        %905 = vmax.xlane.f32.xlu0 %v721
        %v906 = vpop.xlane.xlu0 %905
        %907 = vmax.xlane.f32.xlu0 %v726
        %v908 = vpop.xlane.xlu0 %907
        %909 = vmax.xlane.f32.xlu0 %v731
        %v910 = vpop.xlane.xlu0 %909
        %911 = vmax.xlane.f32.xlu0 %v736
        %v912 = vpop.xlane.xlu0 %911
        %913 = vmax.xlane.f32.xlu0 %v741
        %v914 = vpop.xlane.xlu0 %913
        %915 = vmax.xlane.f32.xlu0 %v746
        %v916 = vpop.xlane.xlu0 %915
        %917 = vmax.xlane.f32.xlu0 %v751
        %v918 = vpop.xlane.xlu0 %917
        %919 = vmax.xlane.f32.xlu0 %v756
        %v920 = vpop.xlane.xlu0 %919
        %921 = vmax.xlane.f32.xlu0 %v761
        %v922 = vpop.xlane.xlu0 %921
        %923 = vmax.xlane.f32.xlu0 %v766
        %v924 = vpop.xlane.xlu0 %923
        %925 = vmax.xlane.f32.xlu0 %v771
        %v926 = vpop.xlane.xlu0 %925
        %927 = vmax.xlane.f32.xlu0 %v776
        %v928 = vpop.xlane.xlu0 %927
        %929 = vmax.xlane.f32.xlu0 %v781
        %v930 = vpop.xlane.xlu0 %929
        %931 = vmax.xlane.f32.xlu0 %v786
        %v932 = vpop.xlane.xlu0 %931
        %933 = vmax.xlane.f32.xlu0 %v791
        %v934 = vpop.xlane.xlu0 %933
        %935 = vmax.xlane.f32.xlu0 %v796
        %v936 = vpop.xlane.xlu0 %935
        %937 = vmax.xlane.f32.xlu0 %v801
        %v938 = vpop.xlane.xlu0 %937
        %939 = vmax.xlane.f32.xlu0 %v806
        %v940 = vpop.xlane.xlu0 %939
        %941 = vmax.xlane.f32.xlu0 %v811
        %v942 = vpop.xlane.xlu0 %941
        %943 = vmax.xlane.f32.xlu0 %v816
        %v944 = vpop.xlane.xlu0 %943
        %945 = vmax.xlane.f32.xlu0 %v821
        %v946 = vpop.xlane.xlu0 %945
        %947 = vmax.xlane.f32.xlu0 %v826
        %v948 = vpop.xlane.xlu0 %947
        %949 = vmax.xlane.f32.xlu0 %v831
        %v950 = vpop.xlane.xlu0 %949
        %951 = vmax.xlane.f32.xlu0 %v836
        %v952 = vpop.xlane.xlu0 %951
        %953 = vmax.xlane.f32.xlu0 %v841
        %v954 = vpop.xlane.xlu0 %953
        %955 = vmax.xlane.f32.xlu0 %v846
        %v956 = vpop.xlane.xlu0 %955
        %957 = vmax.xlane.f32.xlu0 %v851
        %v958 = vpop.xlane.xlu0 %957
        %959 = vmax.xlane.f32.xlu0 %v856
        %v960 = vpop.xlane.xlu0 %959
        %961 = vmax.xlane.f32.xlu0 %v861
        %v962 = vpop.xlane.xlu0 %961
        %963 = vmax.xlane.f32.xlu0 %v866
        %v964 = vpop.xlane.xlu0 %963
        %v965 = vmax.f32 %v869, %v902
        %v966 = vmax.f32 %v870, %v904
        %v967 = vmax.f32 %v871, %v906
        %v968 = vmax.f32 %v872, %v908
        %v969 = vmax.f32 %v873, %v910
        %v970 = vmax.f32 %v874, %v912
        %v971 = vmax.f32 %v875, %v914
        %v972 = vmax.f32 %v876, %v916
        %v973 = vmax.f32 %v877, %v918
        %v974 = vmax.f32 %v878, %v920
        %v975 = vmax.f32 %v879, %v922
        %v976 = vmax.f32 %v880, %v924
        %v977 = vmax.f32 %v881, %v926
        %v978 = vmax.f32 %v882, %v928
        %v979 = vmax.f32 %v883, %v930
        %v980 = vmax.f32 %v884, %v932
        %v981 = vmax.f32 %v885, %v934
        %v982 = vmax.f32 %v886, %v936
        %v983 = vmax.f32 %v887, %v938
        %v984 = vmax.f32 %v888, %v940
        %v985 = vmax.f32 %v889, %v942
        %v986 = vmax.f32 %v890, %v944
        %v987 = vmax.f32 %v891, %v946
        %v988 = vmax.f32 %v892, %v948
        %v989 = vmax.f32 %v893, %v950
        %v990 = vmax.f32 %v894, %v952
        %v991 = vmax.f32 %v895, %v954
        %v992 = vmax.f32 %v896, %v956
        %v993 = vmax.f32 %v897, %v958
        %v994 = vmax.f32 %v898, %v960
        %v995 = vmax.f32 %v899, %v962
        %v996 = vmax.f32 %v900, %v964
        %v997 = vsub.f32 %v869, %v965
        %v998 = vsub.f32 %v870, %v966
        %v999 = vsub.f32 %v871, %v967
        %v1000 = vsub.f32 %v872, %v968
        %v1001 = vsub.f32 %v873, %v969
        %v1002 = vsub.f32 %v874, %v970
        %v1003 = vsub.f32 %v875, %v971
        %v1004 = vsub.f32 %v876, %v972
        %v1005 = vsub.f32 %v877, %v973
        %v1006 = vsub.f32 %v878, %v974
        %v1007 = vsub.f32 %v879, %v975
        %v1008 = vsub.f32 %v880, %v976
        %v1009 = vsub.f32 %v881, %v977
        %v1010 = vsub.f32 %v882, %v978
        %v1011 = vsub.f32 %v883, %v979
        %v1012 = vsub.f32 %v884, %v980
        %v1013 = vsub.f32 %v885, %v981
        %v1014 = vsub.f32 %v886, %v982
        %v1015 = vsub.f32 %v887, %v983
        %v1016 = vsub.f32 %v888, %v984
        %v1017 = vsub.f32 %v889, %v985
        %v1018 = vsub.f32 %v890, %v986
        %v1019 = vsub.f32 %v891, %v987
        %v1020 = vsub.f32 %v892, %v988
        %v1021 = vsub.f32 %v893, %v989
        %v1022 = vsub.f32 %v894, %v990
        %v1023 = vsub.f32 %v895, %v991
        %v1024 = vsub.f32 %v896, %v992
        %v1025 = vsub.f32 %v897, %v993
        %v1026 = vsub.f32 %v898, %v994
        %v1027 = vsub.f32 %v899, %v995
        %v1028 = vsub.f32 %v900, %v996
        %v1029 = vmul.f32 %v997, 1.442695
        %v1030 = vpow.pop %v1029
        %v1031 = vmul.f32 %v998, 1.442695
        %v1032 = vpow.pop %v1031
        %v1033 = vmul.f32 %v999, 1.442695
        %v1034 = vpow.pop %v1033
        %v1035 = vmul.f32 %v1000, 1.442695
        %v1036 = vpow.pop %v1035
        %v1037 = vmul.f32 %v1001, 1.442695
        %v1038 = vpow.pop %v1037
        %v1039 = vmul.f32 %v1002, 1.442695
        %v1040 = vpow.pop %v1039
        %v1041 = vmul.f32 %v1003, 1.442695
        %v1042 = vpow.pop %v1041
        %v1043 = vmul.f32 %v1004, 1.442695
        %v1044 = vpow.pop %v1043
        %v1045 = vmul.f32 %v1005, 1.442695
        %v1046 = vpow.pop %v1045
        %v1047 = vmul.f32 %v1006, 1.442695
        %v1048 = vpow.pop %v1047
        %v1049 = vmul.f32 %v1007, 1.442695
        %v1050 = vpow.pop %v1049
        %v1051 = vmul.f32 %v1008, 1.442695
        %v1052 = vpow.pop %v1051
        %v1053 = vmul.f32 %v1009, 1.442695
        %v1054 = vpow.pop %v1053
        %v1055 = vmul.f32 %v1010, 1.442695
        %v1056 = vpow.pop %v1055
        %v1057 = vmul.f32 %v1011, 1.442695
        %v1058 = vpow.pop %v1057
        %v1059 = vmul.f32 %v1012, 1.442695
        %v1060 = vpow.pop %v1059
        %v1061 = vmul.f32 %v1013, 1.442695
        %v1062 = vpow.pop %v1061
        %v1063 = vmul.f32 %v1014, 1.442695
        %v1064 = vpow.pop %v1063
        %v1065 = vmul.f32 %v1015, 1.442695
        %v1066 = vpow.pop %v1065
        %v1067 = vmul.f32 %v1016, 1.442695
        %v1068 = vpow.pop %v1067
        %v1069 = vmul.f32 %v1017, 1.442695
        %v1070 = vpow.pop %v1069
        %v1071 = vmul.f32 %v1018, 1.442695
        %v1072 = vpow.pop %v1071
        %v1073 = vmul.f32 %v1019, 1.442695
        %v1074 = vpow.pop %v1073
        %v1075 = vmul.f32 %v1020, 1.442695
        %v1076 = vpow.pop %v1075
        %v1077 = vmul.f32 %v1021, 1.442695
        %v1078 = vpow.pop %v1077
        %v1079 = vmul.f32 %v1022, 1.442695
        %v1080 = vpow.pop %v1079
        %v1081 = vmul.f32 %v1023, 1.442695
        %v1082 = vpow.pop %v1081
        %v1083 = vmul.f32 %v1024, 1.442695
        %v1084 = vpow.pop %v1083
        %v1085 = vmul.f32 %v1025, 1.442695
        %v1086 = vpow.pop %v1085
        %v1087 = vmul.f32 %v1026, 1.442695
        %v1088 = vpow.pop %v1087
        %v1089 = vmul.f32 %v1027, 1.442695
        %v1090 = vpow.pop %v1089
        %v1091 = vmul.f32 %v1028, 1.442695
        %v1092 = vpow.pop %v1091
        %1094 = vset.pattern.permute.xlu0 0
        %1095 = vperm.xlu0 %1094, %v965
        %v1096 = vpop.permute.xlu0 %1095
        %1099 = vset.pattern.permute.xlu0 0
        %1100 = vperm.xlu0 %1099, %v966
        %v1101 = vpop.permute.xlu0 %1100
        %1104 = vset.pattern.permute.xlu0 0
        %1105 = vperm.xlu0 %1104, %v967
        %v1106 = vpop.permute.xlu0 %1105
        %1109 = vset.pattern.permute.xlu0 0
        %1110 = vperm.xlu0 %1109, %v968
        %v1111 = vpop.permute.xlu0 %1110
        %1114 = vset.pattern.permute.xlu0 0
        %1115 = vperm.xlu0 %1114, %v969
        %v1116 = vpop.permute.xlu0 %1115
        %1119 = vset.pattern.permute.xlu0 0
        %1120 = vperm.xlu0 %1119, %v970
        %v1121 = vpop.permute.xlu0 %1120
        %1124 = vset.pattern.permute.xlu0 0
        %1125 = vperm.xlu0 %1124, %v971
        %v1126 = vpop.permute.xlu0 %1125
        %1129 = vset.pattern.permute.xlu0 0
        %1130 = vperm.xlu0 %1129, %v972
        %v1131 = vpop.permute.xlu0 %1130
        %1134 = vset.pattern.permute.xlu0 0
        %1135 = vperm.xlu0 %1134, %v973
        %v1136 = vpop.permute.xlu0 %1135
        %1139 = vset.pattern.permute.xlu0 0
        %1140 = vperm.xlu0 %1139, %v974
        %v1141 = vpop.permute.xlu0 %1140
        %1144 = vset.pattern.permute.xlu0 0
        %1145 = vperm.xlu0 %1144, %v975
        %v1146 = vpop.permute.xlu0 %1145
        %1149 = vset.pattern.permute.xlu0 0
        %1150 = vperm.xlu0 %1149, %v976
        %v1151 = vpop.permute.xlu0 %1150
        %1154 = vset.pattern.permute.xlu0 0
        %1155 = vperm.xlu0 %1154, %v977
        %v1156 = vpop.permute.xlu0 %1155
        %1159 = vset.pattern.permute.xlu0 0
        %1160 = vperm.xlu0 %1159, %v978
        %v1161 = vpop.permute.xlu0 %1160
        %1164 = vset.pattern.permute.xlu0 0
        %1165 = vperm.xlu0 %1164, %v979
        %v1166 = vpop.permute.xlu0 %1165
        %1169 = vset.pattern.permute.xlu0 0
        %1170 = vperm.xlu0 %1169, %v980
        %v1171 = vpop.permute.xlu0 %1170
        %1174 = vset.pattern.permute.xlu0 0
        %1175 = vperm.xlu0 %1174, %v981
        %v1176 = vpop.permute.xlu0 %1175
        %1179 = vset.pattern.permute.xlu0 0
        %1180 = vperm.xlu0 %1179, %v982
        %v1181 = vpop.permute.xlu0 %1180
        %1184 = vset.pattern.permute.xlu0 0
        %1185 = vperm.xlu0 %1184, %v983
        %v1186 = vpop.permute.xlu0 %1185
        %1189 = vset.pattern.permute.xlu0 0
        %1190 = vperm.xlu0 %1189, %v984
        %v1191 = vpop.permute.xlu0 %1190
        %1194 = vset.pattern.permute.xlu0 0
        %1195 = vperm.xlu0 %1194, %v985
        %v1196 = vpop.permute.xlu0 %1195
        %1199 = vset.pattern.permute.xlu0 0
        %1200 = vperm.xlu0 %1199, %v986
        %v1201 = vpop.permute.xlu0 %1200
        %1204 = vset.pattern.permute.xlu0 0
        %1205 = vperm.xlu0 %1204, %v987
        %v1206 = vpop.permute.xlu0 %1205
        %1209 = vset.pattern.permute.xlu0 0
        %1210 = vperm.xlu0 %1209, %v988
        %v1211 = vpop.permute.xlu0 %1210
        %1214 = vset.pattern.permute.xlu0 0
        %1215 = vperm.xlu0 %1214, %v989
        %v1216 = vpop.permute.xlu0 %1215
        %1219 = vset.pattern.permute.xlu0 0
        %1220 = vperm.xlu0 %1219, %v990
        %v1221 = vpop.permute.xlu0 %1220
        %1224 = vset.pattern.permute.xlu0 0
        %1225 = vperm.xlu0 %1224, %v991
        %v1226 = vpop.permute.xlu0 %1225
        %1229 = vset.pattern.permute.xlu0 0
        %1230 = vperm.xlu0 %1229, %v992
        %v1231 = vpop.permute.xlu0 %1230
        %1234 = vset.pattern.permute.xlu0 0
        %1235 = vperm.xlu0 %1234, %v993
        %v1236 = vpop.permute.xlu0 %1235
        %1239 = vset.pattern.permute.xlu0 0
        %1240 = vperm.xlu0 %1239, %v994
        %v1241 = vpop.permute.xlu0 %1240
        %1244 = vset.pattern.permute.xlu0 0
        %1245 = vperm.xlu0 %1244, %v995
        %v1246 = vpop.permute.xlu0 %1245
        %1249 = vset.pattern.permute.xlu0 0
        %1250 = vperm.xlu0 %1249, %v996
        %v1251 = vpop.permute.xlu0 %1250
        %v1253 = vsub.f32 %v711, %v1096
        %v1254 = vsub.f32 %v716, %v1101
        %v1255 = vsub.f32 %v721, %v1106
        %v1256 = vsub.f32 %v726, %v1111
        %v1257 = vsub.f32 %v731, %v1116
        %v1258 = vsub.f32 %v736, %v1121
        %v1259 = vsub.f32 %v741, %v1126
        %v1260 = vsub.f32 %v746, %v1131
        %v1261 = vsub.f32 %v751, %v1136
        %v1262 = vsub.f32 %v756, %v1141
        %v1263 = vsub.f32 %v761, %v1146
        %v1264 = vsub.f32 %v766, %v1151
        %v1265 = vsub.f32 %v771, %v1156
        %v1266 = vsub.f32 %v776, %v1161
        %v1267 = vsub.f32 %v781, %v1166
        %v1268 = vsub.f32 %v786, %v1171
        %v1269 = vsub.f32 %v791, %v1176
        %v1270 = vsub.f32 %v796, %v1181
        %v1271 = vsub.f32 %v801, %v1186
        %v1272 = vsub.f32 %v806, %v1191
        %v1273 = vsub.f32 %v811, %v1196
        %v1274 = vsub.f32 %v816, %v1201
        %v1275 = vsub.f32 %v821, %v1206
        %v1276 = vsub.f32 %v826, %v1211
        %v1277 = vsub.f32 %v831, %v1216
        %v1278 = vsub.f32 %v836, %v1221
        %v1279 = vsub.f32 %v841, %v1226
        %v1280 = vsub.f32 %v846, %v1231
        %v1281 = vsub.f32 %v851, %v1236
        %v1282 = vsub.f32 %v856, %v1241
        %v1283 = vsub.f32 %v861, %v1246
        %v1284 = vsub.f32 %v866, %v1251
        %v1285 = vmul.f32 %v1253, 1.442695
        %v1286 = vpow.pop %v1285
        %v1287 = vmul.f32 %v1254, 1.442695
        %v1288 = vpow.pop %v1287
        %v1289 = vmul.f32 %v1255, 1.442695
        %v1290 = vpow.pop %v1289
        %v1291 = vmul.f32 %v1256, 1.442695
        %v1292 = vpow.pop %v1291
        %v1293 = vmul.f32 %v1257, 1.442695
        %v1294 = vpow.pop %v1293
        %v1295 = vmul.f32 %v1258, 1.442695
        %v1296 = vpow.pop %v1295
        %v1297 = vmul.f32 %v1259, 1.442695
        %v1298 = vpow.pop %v1297
        %v1299 = vmul.f32 %v1260, 1.442695
        %v1300 = vpow.pop %v1299
        %v1301 = vmul.f32 %v1261, 1.442695
        %v1302 = vpow.pop %v1301
        %v1303 = vmul.f32 %v1262, 1.442695
        %v1304 = vpow.pop %v1303
        %v1305 = vmul.f32 %v1263, 1.442695
        %v1306 = vpow.pop %v1305
        %v1307 = vmul.f32 %v1264, 1.442695
        %v1308 = vpow.pop %v1307
        %v1309 = vmul.f32 %v1265, 1.442695
        %v1310 = vpow.pop %v1309
        %v1311 = vmul.f32 %v1266, 1.442695
        %v1312 = vpow.pop %v1311
        %v1313 = vmul.f32 %v1267, 1.442695
        %v1314 = vpow.pop %v1313
        %v1315 = vmul.f32 %v1268, 1.442695
        %v1316 = vpow.pop %v1315
        %v1317 = vmul.f32 %v1269, 1.442695
        %v1318 = vpow.pop %v1317
        %v1319 = vmul.f32 %v1270, 1.442695
        %v1320 = vpow.pop %v1319
        %v1321 = vmul.f32 %v1271, 1.442695
        %v1322 = vpow.pop %v1321
        %v1323 = vmul.f32 %v1272, 1.442695
        %v1324 = vpow.pop %v1323
        %v1325 = vmul.f32 %v1273, 1.442695
        %v1326 = vpow.pop %v1325
        %v1327 = vmul.f32 %v1274, 1.442695
        %v1328 = vpow.pop %v1327
        %v1329 = vmul.f32 %v1275, 1.442695
        %v1330 = vpow.pop %v1329
        %v1331 = vmul.f32 %v1276, 1.442695
        %v1332 = vpow.pop %v1331
        %v1333 = vmul.f32 %v1277, 1.442695
        %v1334 = vpow.pop %v1333
        %v1335 = vmul.f32 %v1278, 1.442695
        %v1336 = vpow.pop %v1335
        %v1337 = vmul.f32 %v1279, 1.442695
        %v1338 = vpow.pop %v1337
        %v1339 = vmul.f32 %v1280, 1.442695
        %v1340 = vpow.pop %v1339
        %v1341 = vmul.f32 %v1281, 1.442695
        %v1342 = vpow.pop %v1341
        %v1343 = vmul.f32 %v1282, 1.442695
        %v1344 = vpow.pop %v1343
        %v1345 = vmul.f32 %v1283, 1.442695
        %v1346 = vpow.pop %v1345
        %v1347 = vmul.f32 %v1284, 1.442695
        %v1348 = vpow.pop %v1347
        %v1349 = vld [vmem:[#allocation4] sm:$0xff]
        %v1350 = vld [vmem:[#allocation4 + $0x8] sm:$0xff]
        %v1351 = vld [vmem:[#allocation4 + $0x10] sm:$0xff]
        %v1352 = vld [vmem:[#allocation4 + $0x18] sm:$0xff]
        %v1353 = vld [vmem:[#allocation4 + $0x20] sm:$0xff]
        %v1354 = vld [vmem:[#allocation4 + $0x28] sm:$0xff]
        %v1355 = vld [vmem:[#allocation4 + $0x30] sm:$0xff]
        %v1356 = vld [vmem:[#allocation4 + $0x38] sm:$0xff]
        %v1357 = vld [vmem:[#allocation4 + $0x40] sm:$0xff]
        %v1358 = vld [vmem:[#allocation4 + $0x48] sm:$0xff]
        %v1359 = vld [vmem:[#allocation4 + $0x50] sm:$0xff]
        %v1360 = vld [vmem:[#allocation4 + $0x58] sm:$0xff]
        %v1361 = vld [vmem:[#allocation4 + $0x60] sm:$0xff]
        %v1362 = vld [vmem:[#allocation4 + $0x68] sm:$0xff]
        %v1363 = vld [vmem:[#allocation4 + $0x70] sm:$0xff]
        %v1364 = vld [vmem:[#allocation4 + $0x78] sm:$0xff]
        %v1365 = vld [vmem:[#allocation4 + $0x80] sm:$0xff]
        %v1366 = vld [vmem:[#allocation4 + $0x88] sm:$0xff]
        %v1367 = vld [vmem:[#allocation4 + $0x90] sm:$0xff]
        %v1368 = vld [vmem:[#allocation4 + $0x98] sm:$0xff]
        %v1369 = vld [vmem:[#allocation4 + $0xa0] sm:$0xff]
        %v1370 = vld [vmem:[#allocation4 + $0xa8] sm:$0xff]
        %v1371 = vld [vmem:[#allocation4 + $0xb0] sm:$0xff]
        %v1372 = vld [vmem:[#allocation4 + $0xb8] sm:$0xff]
        %v1373 = vld [vmem:[#allocation4 + $0xc0] sm:$0xff]
        %v1374 = vld [vmem:[#allocation4 + $0xc8] sm:$0xff]
        %v1375 = vld [vmem:[#allocation4 + $0xd0] sm:$0xff]
        %v1376 = vld [vmem:[#allocation4 + $0xd8] sm:$0xff]
        %v1377 = vld [vmem:[#allocation4 + $0xe0] sm:$0xff]
        %v1378 = vld [vmem:[#allocation4 + $0xe8] sm:$0xff]
        %v1379 = vld [vmem:[#allocation4 + $0xf0] sm:$0xff]
        %v1380 = vld [vmem:[#allocation4 + $0xf8] sm:$0xff]
        %v1381 = vmul.f32 %v1030, %v1349
        %v1382 = vmul.f32 %v1032, %v1350
        %v1383 = vmul.f32 %v1034, %v1351
        %v1384 = vmul.f32 %v1036, %v1352
        %v1385 = vmul.f32 %v1038, %v1353
        %v1386 = vmul.f32 %v1040, %v1354
        %v1387 = vmul.f32 %v1042, %v1355
        %v1388 = vmul.f32 %v1044, %v1356
        %v1389 = vmul.f32 %v1046, %v1357
        %v1390 = vmul.f32 %v1048, %v1358
        %v1391 = vmul.f32 %v1050, %v1359
        %v1392 = vmul.f32 %v1052, %v1360
        %v1393 = vmul.f32 %v1054, %v1361
        %v1394 = vmul.f32 %v1056, %v1362
        %v1395 = vmul.f32 %v1058, %v1363
        %v1396 = vmul.f32 %v1060, %v1364
        %v1397 = vmul.f32 %v1062, %v1365
        %v1398 = vmul.f32 %v1064, %v1366
        %v1399 = vmul.f32 %v1066, %v1367
        %v1400 = vmul.f32 %v1068, %v1368
        %v1401 = vmul.f32 %v1070, %v1369
        %v1402 = vmul.f32 %v1072, %v1370
        %v1403 = vmul.f32 %v1074, %v1371
        %v1404 = vmul.f32 %v1076, %v1372
        %v1405 = vmul.f32 %v1078, %v1373
        %v1406 = vmul.f32 %v1080, %v1374
        %v1407 = vmul.f32 %v1082, %v1375
        %v1408 = vmul.f32 %v1084, %v1376
        %v1409 = vmul.f32 %v1086, %v1377
        %v1410 = vmul.f32 %v1088, %v1378
        %v1411 = vmul.f32 %v1090, %v1379
        %v1412 = vmul.f32 %v1092, %v1380
        %1413 = vadd.xlane.f32.xlu0 %v1286
        %v1414 = vpop.xlane.xlu0 %1413
        %1415 = vadd.xlane.f32.xlu0 %v1288
        %v1416 = vpop.xlane.xlu0 %1415
        %1417 = vadd.xlane.f32.xlu0 %v1290
        %v1418 = vpop.xlane.xlu0 %1417
        %1419 = vadd.xlane.f32.xlu0 %v1292
        %v1420 = vpop.xlane.xlu0 %1419
        %1421 = vadd.xlane.f32.xlu0 %v1294
        %v1422 = vpop.xlane.xlu0 %1421
        %1423 = vadd.xlane.f32.xlu0 %v1296
        %v1424 = vpop.xlane.xlu0 %1423
        %1425 = vadd.xlane.f32.xlu0 %v1298
        %v1426 = vpop.xlane.xlu0 %1425
        %1427 = vadd.xlane.f32.xlu0 %v1300
        %v1428 = vpop.xlane.xlu0 %1427
        %1429 = vadd.xlane.f32.xlu0 %v1302
        %v1430 = vpop.xlane.xlu0 %1429
        %1431 = vadd.xlane.f32.xlu0 %v1304
        %v1432 = vpop.xlane.xlu0 %1431
        %1433 = vadd.xlane.f32.xlu0 %v1306
        %v1434 = vpop.xlane.xlu0 %1433
        %1435 = vadd.xlane.f32.xlu0 %v1308
        %v1436 = vpop.xlane.xlu0 %1435
        %1437 = vadd.xlane.f32.xlu0 %v1310
        %v1438 = vpop.xlane.xlu0 %1437
        %1439 = vadd.xlane.f32.xlu0 %v1312
        %v1440 = vpop.xlane.xlu0 %1439
        %1441 = vadd.xlane.f32.xlu0 %v1314
        %v1442 = vpop.xlane.xlu0 %1441
        %1443 = vadd.xlane.f32.xlu0 %v1316
        %v1444 = vpop.xlane.xlu0 %1443
        %1445 = vadd.xlane.f32.xlu0 %v1318
        %v1446 = vpop.xlane.xlu0 %1445
        %1447 = vadd.xlane.f32.xlu0 %v1320
        %v1448 = vpop.xlane.xlu0 %1447
        %1449 = vadd.xlane.f32.xlu0 %v1322
        %v1450 = vpop.xlane.xlu0 %1449
        %1451 = vadd.xlane.f32.xlu0 %v1324
        %v1452 = vpop.xlane.xlu0 %1451
        %1453 = vadd.xlane.f32.xlu0 %v1326
        %v1454 = vpop.xlane.xlu0 %1453
        %1455 = vadd.xlane.f32.xlu0 %v1328
        %v1456 = vpop.xlane.xlu0 %1455
        %1457 = vadd.xlane.f32.xlu0 %v1330
        %v1458 = vpop.xlane.xlu0 %1457
        %1459 = vadd.xlane.f32.xlu0 %v1332
        %v1460 = vpop.xlane.xlu0 %1459
        %1461 = vadd.xlane.f32.xlu0 %v1334
        %v1462 = vpop.xlane.xlu0 %1461
        %1463 = vadd.xlane.f32.xlu0 %v1336
        %v1464 = vpop.xlane.xlu0 %1463
        %1465 = vadd.xlane.f32.xlu0 %v1338
        %v1466 = vpop.xlane.xlu0 %1465
        %1467 = vadd.xlane.f32.xlu0 %v1340
        %v1468 = vpop.xlane.xlu0 %1467
        %1469 = vadd.xlane.f32.xlu0 %v1342
        %v1470 = vpop.xlane.xlu0 %1469
        %1471 = vadd.xlane.f32.xlu0 %v1344
        %v1472 = vpop.xlane.xlu0 %1471
        %1473 = vadd.xlane.f32.xlu0 %v1346
        %v1474 = vpop.xlane.xlu0 %1473
        %1475 = vadd.xlane.f32.xlu0 %v1348
        %v1476 = vpop.xlane.xlu0 %1475
        %v1477 = vadd.f32 %v1381, %v1414
        %v1478 = vadd.f32 %v1382, %v1416
        %v1479 = vadd.f32 %v1383, %v1418
        %v1480 = vadd.f32 %v1384, %v1420
        %v1481 = vadd.f32 %v1385, %v1422
        %v1482 = vadd.f32 %v1386, %v1424
        %v1483 = vadd.f32 %v1387, %v1426
        %v1484 = vadd.f32 %v1388, %v1428
        %v1485 = vadd.f32 %v1389, %v1430
        %v1486 = vadd.f32 %v1390, %v1432
        %v1487 = vadd.f32 %v1391, %v1434
        %v1488 = vadd.f32 %v1392, %v1436
        %v1489 = vadd.f32 %v1393, %v1438
        %v1490 = vadd.f32 %v1394, %v1440
        %v1491 = vadd.f32 %v1395, %v1442
        %v1492 = vadd.f32 %v1396, %v1444
        %v1493 = vadd.f32 %v1397, %v1446
        %v1494 = vadd.f32 %v1398, %v1448
        %v1495 = vadd.f32 %v1399, %v1450
        %v1496 = vadd.f32 %v1400, %v1452
        %v1497 = vadd.f32 %v1401, %v1454
        %v1498 = vadd.f32 %v1402, %v1456
        %v1499 = vadd.f32 %v1403, %v1458
        %v1500 = vadd.f32 %v1404, %v1460
        %v1501 = vadd.f32 %v1405, %v1462
        %v1502 = vadd.f32 %v1406, %v1464
        %v1503 = vadd.f32 %v1407, %v1466
        %v1504 = vadd.f32 %v1408, %v1468
        %v1505 = vadd.f32 %v1409, %v1470
        %v1506 = vadd.f32 %v1410, %v1472
        %v1507 = vadd.f32 %v1411, %v1474
        %v1508 = vadd.f32 %v1412, %v1476
        %vm1509 = vcmask 7168
        %1510 = vst.msk [vmem:[#allocation4] sm:$0xff] %vm1509, %v1477
        %1511 = vst.msk [vmem:[#allocation4 + $0x8] sm:$0xff] %vm1509, %v1478
        %1512 = vst.msk [vmem:[#allocation4 + $0x10] sm:$0xff] %vm1509, %v1479
        %1513 = vst.msk [vmem:[#allocation4 + $0x18] sm:$0xff] %vm1509, %v1480
        %1514 = vst.msk [vmem:[#allocation4 + $0x20] sm:$0xff] %vm1509, %v1481
        %1515 = vst.msk [vmem:[#allocation4 + $0x28] sm:$0xff] %vm1509, %v1482
        %1516 = vst.msk [vmem:[#allocation4 + $0x30] sm:$0xff] %vm1509, %v1483
        %1517 = vst.msk [vmem:[#allocation4 + $0x38] sm:$0xff] %vm1509, %v1484
        %1518 = vst.msk [vmem:[#allocation4 + $0x40] sm:$0xff] %vm1509, %v1485
        %1519 = vst.msk [vmem:[#allocation4 + $0x48] sm:$0xff] %vm1509, %v1486
        %1520 = vst.msk [vmem:[#allocation4 + $0x50] sm:$0xff] %vm1509, %v1487
        %1521 = vst.msk [vmem:[#allocation4 + $0x58] sm:$0xff] %vm1509, %v1488
        %1522 = vst.msk [vmem:[#allocation4 + $0x60] sm:$0xff] %vm1509, %v1489
        %1523 = vst.msk [vmem:[#allocation4 + $0x68] sm:$0xff] %vm1509, %v1490
        %1524 = vst.msk [vmem:[#allocation4 + $0x70] sm:$0xff] %vm1509, %v1491
        %1525 = vst.msk [vmem:[#allocation4 + $0x78] sm:$0xff] %vm1509, %v1492
        %1526 = vst.msk [vmem:[#allocation4 + $0x80] sm:$0xff] %vm1509, %v1493
        %1527 = vst.msk [vmem:[#allocation4 + $0x88] sm:$0xff] %vm1509, %v1494
        %1528 = vst.msk [vmem:[#allocation4 + $0x90] sm:$0xff] %vm1509, %v1495
        %1529 = vst.msk [vmem:[#allocation4 + $0x98] sm:$0xff] %vm1509, %v1496
        %1530 = vst.msk [vmem:[#allocation4 + $0xa0] sm:$0xff] %vm1509, %v1497
        %1531 = vst.msk [vmem:[#allocation4 + $0xa8] sm:$0xff] %vm1509, %v1498
        %1532 = vst.msk [vmem:[#allocation4 + $0xb0] sm:$0xff] %vm1509, %v1499
        %1533 = vst.msk [vmem:[#allocation4 + $0xb8] sm:$0xff] %vm1509, %v1500
        %1534 = vst.msk [vmem:[#allocation4 + $0xc0] sm:$0xff] %vm1509, %v1501
        %1535 = vst.msk [vmem:[#allocation4 + $0xc8] sm:$0xff] %vm1509, %v1502
        %1536 = vst.msk [vmem:[#allocation4 + $0xd0] sm:$0xff] %vm1509, %v1503
        %1537 = vst.msk [vmem:[#allocation4 + $0xd8] sm:$0xff] %vm1509, %v1504
        %1538 = vst.msk [vmem:[#allocation4 + $0xe0] sm:$0xff] %vm1509, %v1505
        %1539 = vst.msk [vmem:[#allocation4 + $0xe8] sm:$0xff] %vm1509, %v1506
        %1540 = vst.msk [vmem:[#allocation4 + $0xf0] sm:$0xff] %vm1509, %v1507
        %1541 = vst.msk [vmem:[#allocation4 + $0xf8] sm:$0xff] %vm1509, %v1508
        %v1542 = vld [vmem:[#allocation5] sm:$0xff]
        %v1543 = vld [vmem:[#allocation5 + $0x8] sm:$0xff]
        %v1544 = vld [vmem:[#allocation5 + $0x10] sm:$0xff]
        %v1545 = vld [vmem:[#allocation5 + $0x18] sm:$0xff]
        %v1546 = vld [vmem:[#allocation5 + $0x20] sm:$0xff]
        %v1547 = vld [vmem:[#allocation5 + $0x28] sm:$0xff]
        %v1548 = vld [vmem:[#allocation5 + $0x30] sm:$0xff]
        %v1549 = vld [vmem:[#allocation5 + $0x38] sm:$0xff]
        %v1550 = vld [vmem:[#allocation5 + $0x40] sm:$0xff]
        %v1551 = vld [vmem:[#allocation5 + $0x48] sm:$0xff]
        %v1552 = vld [vmem:[#allocation5 + $0x50] sm:$0xff]
        %v1553 = vld [vmem:[#allocation5 + $0x58] sm:$0xff]
        %v1554 = vld [vmem:[#allocation5 + $0x60] sm:$0xff]
        %v1555 = vld [vmem:[#allocation5 + $0x68] sm:$0xff]
        %v1556 = vld [vmem:[#allocation5 + $0x70] sm:$0xff]
        %v1557 = vld [vmem:[#allocation5 + $0x78] sm:$0xff]
        %v1558 = vld [vmem:[#allocation5 + $0x80] sm:$0xff]
        %v1559 = vld [vmem:[#allocation5 + $0x88] sm:$0xff]
        %v1560 = vld [vmem:[#allocation5 + $0x90] sm:$0xff]
        %v1561 = vld [vmem:[#allocation5 + $0x98] sm:$0xff]
        %v1562 = vld [vmem:[#allocation5 + $0xa0] sm:$0xff]
        %v1563 = vld [vmem:[#allocation5 + $0xa8] sm:$0xff]
        %v1564 = vld [vmem:[#allocation5 + $0xb0] sm:$0xff]
        %v1565 = vld [vmem:[#allocation5 + $0xb8] sm:$0xff]
        %v1566 = vld [vmem:[#allocation5 + $0xc0] sm:$0xff]
        %v1567 = vld [vmem:[#allocation5 + $0xc8] sm:$0xff]
        %v1568 = vld [vmem:[#allocation5 + $0xd0] sm:$0xff]
        %v1569 = vld [vmem:[#allocation5 + $0xd8] sm:$0xff]
        %v1570 = vld [vmem:[#allocation5 + $0xe0] sm:$0xff]
        %v1571 = vld [vmem:[#allocation5 + $0xe8] sm:$0xff]
        %v1572 = vld [vmem:[#allocation5 + $0xf0] sm:$0xff]
        %v1573 = vld [vmem:[#allocation5 + $0xf8] sm:$0xff]
        %1575 = vset.pattern.permute.xlu0 0
        %1576 = vperm.xlu0 %1575, %v1030
        %v1577 = vpop.permute.xlu0 %1576
        %1580 = vset.pattern.permute.xlu0 0
        %1581 = vperm.xlu0 %1580, %v1032
        %v1582 = vpop.permute.xlu0 %1581
        %1585 = vset.pattern.permute.xlu0 0
        %1586 = vperm.xlu0 %1585, %v1034
        %v1587 = vpop.permute.xlu0 %1586
        %1590 = vset.pattern.permute.xlu0 0
        %1591 = vperm.xlu0 %1590, %v1036
        %v1592 = vpop.permute.xlu0 %1591
        %1595 = vset.pattern.permute.xlu0 0
        %1596 = vperm.xlu0 %1595, %v1038
        %v1597 = vpop.permute.xlu0 %1596
        %1600 = vset.pattern.permute.xlu0 0
        %1601 = vperm.xlu0 %1600, %v1040
        %v1602 = vpop.permute.xlu0 %1601
        %1605 = vset.pattern.permute.xlu0 0
        %1606 = vperm.xlu0 %1605, %v1042
        %v1607 = vpop.permute.xlu0 %1606
        %1610 = vset.pattern.permute.xlu0 0
        %1611 = vperm.xlu0 %1610, %v1044
        %v1612 = vpop.permute.xlu0 %1611
        %1615 = vset.pattern.permute.xlu0 0
        %1616 = vperm.xlu0 %1615, %v1046
        %v1617 = vpop.permute.xlu0 %1616
        %1620 = vset.pattern.permute.xlu0 0
        %1621 = vperm.xlu0 %1620, %v1048
        %v1622 = vpop.permute.xlu0 %1621
        %1625 = vset.pattern.permute.xlu0 0
        %1626 = vperm.xlu0 %1625, %v1050
        %v1627 = vpop.permute.xlu0 %1626
        %1630 = vset.pattern.permute.xlu0 0
        %1631 = vperm.xlu0 %1630, %v1052
        %v1632 = vpop.permute.xlu0 %1631
        %1635 = vset.pattern.permute.xlu0 0
        %1636 = vperm.xlu0 %1635, %v1054
        %v1637 = vpop.permute.xlu0 %1636
        %1640 = vset.pattern.permute.xlu0 0
        %1641 = vperm.xlu0 %1640, %v1056
        %v1642 = vpop.permute.xlu0 %1641
        %1645 = vset.pattern.permute.xlu0 0
        %1646 = vperm.xlu0 %1645, %v1058
        %v1647 = vpop.permute.xlu0 %1646
        %1650 = vset.pattern.permute.xlu0 0
        %1651 = vperm.xlu0 %1650, %v1060
        %v1652 = vpop.permute.xlu0 %1651
        %1655 = vset.pattern.permute.xlu0 0
        %1656 = vperm.xlu0 %1655, %v1062
        %v1657 = vpop.permute.xlu0 %1656
        %1660 = vset.pattern.permute.xlu0 0
        %1661 = vperm.xlu0 %1660, %v1064
        %v1662 = vpop.permute.xlu0 %1661
        %1665 = vset.pattern.permute.xlu0 0
        %1666 = vperm.xlu0 %1665, %v1066
        %v1667 = vpop.permute.xlu0 %1666
        %1670 = vset.pattern.permute.xlu0 0
        %1671 = vperm.xlu0 %1670, %v1068
        %v1672 = vpop.permute.xlu0 %1671
        %1675 = vset.pattern.permute.xlu0 0
        %1676 = vperm.xlu0 %1675, %v1070
        %v1677 = vpop.permute.xlu0 %1676
        %1680 = vset.pattern.permute.xlu0 0
        %1681 = vperm.xlu0 %1680, %v1072
        %v1682 = vpop.permute.xlu0 %1681
        %1685 = vset.pattern.permute.xlu0 0
        %1686 = vperm.xlu0 %1685, %v1074
        %v1687 = vpop.permute.xlu0 %1686
        %1690 = vset.pattern.permute.xlu0 0
        %1691 = vperm.xlu0 %1690, %v1076
        %v1692 = vpop.permute.xlu0 %1691
        %1695 = vset.pattern.permute.xlu0 0
        %1696 = vperm.xlu0 %1695, %v1078
        %v1697 = vpop.permute.xlu0 %1696
        %1700 = vset.pattern.permute.xlu0 0
        %1701 = vperm.xlu0 %1700, %v1080
        %v1702 = vpop.permute.xlu0 %1701
        %1705 = vset.pattern.permute.xlu0 0
        %1706 = vperm.xlu0 %1705, %v1082
        %v1707 = vpop.permute.xlu0 %1706
        %1710 = vset.pattern.permute.xlu0 0
        %1711 = vperm.xlu0 %1710, %v1084
        %v1712 = vpop.permute.xlu0 %1711
        %1715 = vset.pattern.permute.xlu0 0
        %1716 = vperm.xlu0 %1715, %v1086
        %v1717 = vpop.permute.xlu0 %1716
        %1720 = vset.pattern.permute.xlu0 0
        %1721 = vperm.xlu0 %1720, %v1088
        %v1722 = vpop.permute.xlu0 %1721
        %1725 = vset.pattern.permute.xlu0 0
        %1726 = vperm.xlu0 %1725, %v1090
        %v1727 = vpop.permute.xlu0 %1726
        %1730 = vset.pattern.permute.xlu0 0
        %1731 = vperm.xlu0 %1730, %v1092
        %v1732 = vpop.permute.xlu0 %1731
        %v1734 = vmul.f32 %v1577, %v1542
        %v1735 = vmul.f32 %v1582, %v1543
        %v1736 = vmul.f32 %v1587, %v1544
        %v1737 = vmul.f32 %v1592, %v1545
        %v1738 = vmul.f32 %v1597, %v1546
        %v1739 = vmul.f32 %v1602, %v1547
        %v1740 = vmul.f32 %v1607, %v1548
        %v1741 = vmul.f32 %v1612, %v1549
        %v1742 = vmul.f32 %v1617, %v1550
        %v1743 = vmul.f32 %v1622, %v1551
        %v1744 = vmul.f32 %v1627, %v1552
        %v1745 = vmul.f32 %v1632, %v1553
        %v1746 = vmul.f32 %v1637, %v1554
        %v1747 = vmul.f32 %v1642, %v1555
        %v1748 = vmul.f32 %v1647, %v1556
        %v1749 = vmul.f32 %v1652, %v1557
        %v1750 = vmul.f32 %v1657, %v1558
        %v1751 = vmul.f32 %v1662, %v1559
        %v1752 = vmul.f32 %v1667, %v1560
        %v1753 = vmul.f32 %v1672, %v1561
        %v1754 = vmul.f32 %v1677, %v1562
        %v1755 = vmul.f32 %v1682, %v1563
        %v1756 = vmul.f32 %v1687, %v1564
        %v1757 = vmul.f32 %v1692, %v1565
        %v1758 = vmul.f32 %v1697, %v1566
        %v1759 = vmul.f32 %v1702, %v1567
        %v1760 = vmul.f32 %v1707, %v1568
        %v1761 = vmul.f32 %v1712, %v1569
        %v1762 = vmul.f32 %v1717, %v1570
        %v1763 = vmul.f32 %v1722, %v1571
        %v1764 = vmul.f32 %v1727, %v1572
        %v1765 = vmul.f32 %v1732, %v1573
        %1766 = vmatprep.subr.mxu0 0.0
        %1767 = vmatpush1.xpose.msra.mxu0 0.0
        %1768 = vmatprep.subr.mxu0 0.0
        %1769 = vmatpush1.xpose.msra.mxu0 0.0
        %1770 = vmatprep.subr.mxu0 0.0
        %1771 = vmatpush1.xpose.msra.mxu0 0.0
        %1772 = vmatprep.subr.mxu0 0.0
        %1773 = vmatpush1.xpose.msra.mxu0 0.0
        %1774 = vmatprep.subr.mxu0 0.0
        %1775 = vmatpush1.xpose.msra.mxu0 0.0
        %1776 = vmatprep.subr.mxu0 0.0
        %1777 = vmatpush1.xpose.msra.mxu0 0.0
        %1778 = vmatprep.subr.mxu0 0.0
        %1779 = vmatpush1.xpose.msra.mxu0 0.0
        %1780 = vmatprep.subr.mxu0 0.0
        %1781 = vmatpush1.xpose.msra.mxu0 0.0
        %1782 = vmatprep.subr.mxu0 0.0
        %1783 = vmatpush1.xpose.msra.mxu0 %v466
        %1784 = vmatprep.subr.mxu0 0.0
        %1785 = vmatpush1.xpose.msra.mxu0 %v465
        %1786 = vmatprep.subr.mxu0 0.0
        %1787 = vmatpush1.xpose.msra.mxu0 %v464
        %1788 = vmatprep.subr.mxu0 0.0
        %1789 = vmatpush1.xpose.msra.mxu0 %v463
        %1790 = vmatprep.subr.mxu0 0.0
        %1791 = vmatpush1.xpose.msra.mxu0 %v462
        %1792 = vmatprep.subr.mxu0 0.0
        %1793 = vmatpush1.xpose.msra.mxu0 %v461
        %1794 = vmatprep.subr.mxu0 0.0
        %1795 = vmatpush1.xpose.msra.mxu0 %v460
        %1796 = vmatprep.subr.mxu0 0.0
        %1797 = vmatpush1.xpose.msra.mxu0 %v459
        %1798 = vmatprep.subr.mxu0 0.0
        %1799 = vmatpush2.xpose.msra.mxu0 0.0
        %1800 = vmatprep.subr.mxu0 0.0
        %1801 = vmatpush2.xpose.msra.mxu0 0.0
        %1802 = vmatprep.subr.mxu0 0.0
        %1803 = vmatpush2.xpose.msra.mxu0 0.0
        %1804 = vmatprep.subr.mxu0 0.0
        %1805 = vmatpush2.xpose.msra.mxu0 0.0
        %1806 = vmatprep.subr.mxu0 0.0
        %1807 = vmatpush2.xpose.msra.mxu0 0.0
        %1808 = vmatprep.subr.mxu0 0.0
        %1809 = vmatpush2.xpose.msra.mxu0 0.0
        %1810 = vmatprep.subr.mxu0 0.0
        %1811 = vmatpush2.xpose.msra.mxu0 0.0
        %1812 = vmatprep.subr.mxu0 0.0
        %1813 = vmatpush2.xpose.msra.mxu0 0.0
        %1814 = vmatprep.subr.mxu0 0.0
        %1815 = vmatpush2.xpose.msra.mxu0 0.0
        %1816 = vmatprep.subr.mxu0 0.0
        %1817 = vmatpush2.xpose.msra.mxu0 0.0
        %1818 = vmatprep.subr.mxu0 0.0
        %1819 = vmatpush2.xpose.msra.mxu0 0.0
        %1820 = vmatprep.subr.mxu0 0.0
        %1821 = vmatpush2.xpose.msra.mxu0 0.0
        %1822 = vmatprep.subr.mxu0 0.0
        %1823 = vmatpush2.xpose.msra.mxu0 0.0
        %1824 = vmatprep.subr.mxu0 0.0
        %1825 = vmatpush2.xpose.msra.mxu0 0.0
        %1826 = vmatprep.subr.mxu0 0.0
        %1827 = vmatpush2.xpose.msra.mxu0 0.0
        %1828 = vmatprep.subr.mxu0 0.0
        %1829 = vmatpush2.xpose.msra.mxu0 0.0
        %1830 = vmatprep.mubr.f32.mxu0 0.0
        %1831 = vmatmul.mubr.f32.gmra.mxu0 %v1286
        %v1832 = vpop.f32.mrf.mxu0
        %v1833 = vadd.f32 0.0, %v1832
        %v1834 = vpop.f32.mrf.mxu0
        %1835 = vmatprep.mubr.f32.mxu0 0.0
        %1836 = vmatmul.mubr.f32.gmra.mxu0 %v1288
        %v1837 = vpop.f32.mrf.mxu0
        %v1838 = vadd.f32 0.0, %v1837
        %v1839 = vpop.f32.mrf.mxu0
        %1840 = vmatprep.mubr.f32.mxu0 0.0
        %1841 = vmatmul.mubr.f32.gmra.mxu0 %v1290
        %v1842 = vpop.f32.mrf.mxu0
        %v1843 = vadd.f32 0.0, %v1842
        %v1844 = vpop.f32.mrf.mxu0
        %1845 = vmatprep.mubr.f32.mxu0 0.0
        %1846 = vmatmul.mubr.f32.gmra.mxu0 %v1292
        %v1847 = vpop.f32.mrf.mxu0
        %v1848 = vadd.f32 0.0, %v1847
        %v1849 = vpop.f32.mrf.mxu0
        %1850 = vmatprep.mubr.f32.mxu0 0.0
        %1851 = vmatmul.mubr.f32.gmra.mxu0 %v1294
        %v1852 = vpop.f32.mrf.mxu0
        %v1853 = vadd.f32 0.0, %v1852
        %v1854 = vpop.f32.mrf.mxu0
        %1855 = vmatprep.mubr.f32.mxu0 0.0
        %1856 = vmatmul.mubr.f32.gmra.mxu0 %v1296
        %v1857 = vpop.f32.mrf.mxu0
        %v1858 = vadd.f32 0.0, %v1857
        %v1859 = vpop.f32.mrf.mxu0
        %1860 = vmatprep.mubr.f32.mxu0 0.0
        %1861 = vmatmul.mubr.f32.gmra.mxu0 %v1298
        %v1862 = vpop.f32.mrf.mxu0
        %v1863 = vadd.f32 0.0, %v1862
        %v1864 = vpop.f32.mrf.mxu0
        %1865 = vmatprep.mubr.f32.mxu0 0.0
        %1866 = vmatmul.mubr.f32.gmra.mxu0 %v1300
        %v1867 = vpop.f32.mrf.mxu0
        %v1868 = vadd.f32 0.0, %v1867
        %v1869 = vpop.f32.mrf.mxu0
        %1870 = vmatprep.mubr.f32.mxu0 0.0
        %1871 = vmatmul.mubr.f32.gmra.mxu0 %v1302
        %v1872 = vpop.f32.mrf.mxu0
        %v1873 = vadd.f32 0.0, %v1872
        %v1874 = vpop.f32.mrf.mxu0
        %1875 = vmatprep.mubr.f32.mxu0 0.0
        %1876 = vmatmul.mubr.f32.gmra.mxu0 %v1304
        %v1877 = vpop.f32.mrf.mxu0
        %v1878 = vadd.f32 0.0, %v1877
        %v1879 = vpop.f32.mrf.mxu0
        %1880 = vmatprep.mubr.f32.mxu0 0.0
        %1881 = vmatmul.mubr.f32.gmra.mxu0 %v1306
        %v1882 = vpop.f32.mrf.mxu0
        %v1883 = vadd.f32 0.0, %v1882
        %v1884 = vpop.f32.mrf.mxu0
        %1885 = vmatprep.mubr.f32.mxu0 0.0
        %1886 = vmatmul.mubr.f32.gmra.mxu0 %v1308
        %v1887 = vpop.f32.mrf.mxu0
        %v1888 = vadd.f32 0.0, %v1887
        %v1889 = vpop.f32.mrf.mxu0
        %1890 = vmatprep.mubr.f32.mxu0 0.0
        %1891 = vmatmul.mubr.f32.gmra.mxu0 %v1310
        %v1892 = vpop.f32.mrf.mxu0
        %v1893 = vadd.f32 0.0, %v1892
        %v1894 = vpop.f32.mrf.mxu0
        %1895 = vmatprep.mubr.f32.mxu0 0.0
        %1896 = vmatmul.mubr.f32.gmra.mxu0 %v1312
        %v1897 = vpop.f32.mrf.mxu0
        %v1898 = vadd.f32 0.0, %v1897
        %v1899 = vpop.f32.mrf.mxu0
        %1900 = vmatprep.mubr.f32.mxu0 0.0
        %1901 = vmatmul.mubr.f32.gmra.mxu0 %v1314
        %v1902 = vpop.f32.mrf.mxu0
        %v1903 = vadd.f32 0.0, %v1902
        %v1904 = vpop.f32.mrf.mxu0
        %1905 = vmatprep.mubr.f32.mxu0 0.0
        %1906 = vmatmul.mubr.f32.gmra.mxu0 %v1316
        %v1907 = vpop.f32.mrf.mxu0
        %v1908 = vadd.f32 0.0, %v1907
        %v1909 = vpop.f32.mrf.mxu0
        %1910 = vmatprep.mubr.f32.mxu0 0.0
        %1911 = vmatmul.mubr.f32.gmra.mxu0 %v1318
        %v1912 = vpop.f32.mrf.mxu0
        %v1913 = vadd.f32 0.0, %v1912
        %v1914 = vpop.f32.mrf.mxu0
        %1915 = vmatprep.mubr.f32.mxu0 0.0
        %1916 = vmatmul.mubr.f32.gmra.mxu0 %v1320
        %v1917 = vpop.f32.mrf.mxu0
        %v1918 = vadd.f32 0.0, %v1917
        %v1919 = vpop.f32.mrf.mxu0
        %1920 = vmatprep.mubr.f32.mxu0 0.0
        %1921 = vmatmul.mubr.f32.gmra.mxu0 %v1322
        %v1922 = vpop.f32.mrf.mxu0
        %v1923 = vadd.f32 0.0, %v1922
        %v1924 = vpop.f32.mrf.mxu0
        %1925 = vmatprep.mubr.f32.mxu0 0.0
        %1926 = vmatmul.mubr.f32.gmra.mxu0 %v1324
        %v1927 = vpop.f32.mrf.mxu0
        %v1928 = vadd.f32 0.0, %v1927
        %v1929 = vpop.f32.mrf.mxu0
        %1930 = vmatprep.mubr.f32.mxu0 0.0
        %1931 = vmatmul.mubr.f32.gmra.mxu0 %v1326
        %v1932 = vpop.f32.mrf.mxu0
        %v1933 = vadd.f32 0.0, %v1932
        %v1934 = vpop.f32.mrf.mxu0
        %1935 = vmatprep.mubr.f32.mxu0 0.0
        %1936 = vmatmul.mubr.f32.gmra.mxu0 %v1328
        %v1937 = vpop.f32.mrf.mxu0
        %v1938 = vadd.f32 0.0, %v1937
        %v1939 = vpop.f32.mrf.mxu0
        %1940 = vmatprep.mubr.f32.mxu0 0.0
        %1941 = vmatmul.mubr.f32.gmra.mxu0 %v1330
        %v1942 = vpop.f32.mrf.mxu0
        %v1943 = vadd.f32 0.0, %v1942
        %v1944 = vpop.f32.mrf.mxu0
        %1945 = vmatprep.mubr.f32.mxu0 0.0
        %1946 = vmatmul.mubr.f32.gmra.mxu0 %v1332
        %v1947 = vpop.f32.mrf.mxu0
        %v1948 = vadd.f32 0.0, %v1947
        %v1949 = vpop.f32.mrf.mxu0
        %1950 = vmatprep.mubr.f32.mxu0 0.0
        %1951 = vmatmul.mubr.f32.gmra.mxu0 %v1334
        %v1952 = vpop.f32.mrf.mxu0
        %v1953 = vadd.f32 0.0, %v1952
        %v1954 = vpop.f32.mrf.mxu0
        %1955 = vmatprep.mubr.f32.mxu0 0.0
        %1956 = vmatmul.mubr.f32.gmra.mxu0 %v1336
        %v1957 = vpop.f32.mrf.mxu0
        %v1958 = vadd.f32 0.0, %v1957
        %v1959 = vpop.f32.mrf.mxu0
        %1960 = vmatprep.mubr.f32.mxu0 0.0
        %1961 = vmatmul.mubr.f32.gmra.mxu0 %v1338
        %v1962 = vpop.f32.mrf.mxu0
        %v1963 = vadd.f32 0.0, %v1962
        %v1964 = vpop.f32.mrf.mxu0
        %1965 = vmatprep.mubr.f32.mxu0 0.0
        %1966 = vmatmul.mubr.f32.gmra.mxu0 %v1340
        %v1967 = vpop.f32.mrf.mxu0
        %v1968 = vadd.f32 0.0, %v1967
        %v1969 = vpop.f32.mrf.mxu0
        %1970 = vmatprep.mubr.f32.mxu0 0.0
        %1971 = vmatmul.mubr.f32.gmra.mxu0 %v1342
        %v1972 = vpop.f32.mrf.mxu0
        %v1973 = vadd.f32 0.0, %v1972
        %v1974 = vpop.f32.mrf.mxu0
        %1975 = vmatprep.mubr.f32.mxu0 0.0
        %1976 = vmatmul.mubr.f32.gmra.mxu0 %v1344
        %v1977 = vpop.f32.mrf.mxu0
        %v1978 = vadd.f32 0.0, %v1977
        %v1979 = vpop.f32.mrf.mxu0
        %1980 = vmatprep.mubr.f32.mxu0 0.0
        %1981 = vmatmul.mubr.f32.gmra.mxu0 %v1346
        %v1982 = vpop.f32.mrf.mxu0
        %v1983 = vadd.f32 0.0, %v1982
        %v1984 = vpop.f32.mrf.mxu0
        %1985 = vmatprep.mubr.f32.mxu0 0.0
        %1986 = vmatmul.mubr.f32.gmra.mxu0 %v1348
        %v1987 = vpop.f32.mrf.mxu0
        %v1988 = vadd.f32 0.0, %v1987
        %v1989 = vpop.f32.mrf.mxu0
        %1990 = vdwg.mxu0
        %v1991 = vadd.f32 %v1734, %v1833
        %v1992 = vadd.f32 %v1735, %v1838
        %v1993 = vadd.f32 %v1736, %v1843
        %v1994 = vadd.f32 %v1737, %v1848
        %v1995 = vadd.f32 %v1738, %v1853
        %v1996 = vadd.f32 %v1739, %v1858
        %v1997 = vadd.f32 %v1740, %v1863
        %v1998 = vadd.f32 %v1741, %v1868
        %v1999 = vadd.f32 %v1742, %v1873
        %v2000 = vadd.f32 %v1743, %v1878
        %v2001 = vadd.f32 %v1744, %v1883
        %v2002 = vadd.f32 %v1745, %v1888
        %v2003 = vadd.f32 %v1746, %v1893
        %v2004 = vadd.f32 %v1747, %v1898
        %v2005 = vadd.f32 %v1748, %v1903
        %v2006 = vadd.f32 %v1749, %v1908
        %v2007 = vadd.f32 %v1750, %v1913
        %v2008 = vadd.f32 %v1751, %v1918
        %v2009 = vadd.f32 %v1752, %v1923
        %v2010 = vadd.f32 %v1753, %v1928
        %v2011 = vadd.f32 %v1754, %v1933
        %v2012 = vadd.f32 %v1755, %v1938
        %v2013 = vadd.f32 %v1756, %v1943
        %v2014 = vadd.f32 %v1757, %v1948
        %v2015 = vadd.f32 %v1758, %v1953
        %v2016 = vadd.f32 %v1759, %v1958
        %v2017 = vadd.f32 %v1760, %v1963
        %v2018 = vadd.f32 %v1761, %v1968
        %v2019 = vadd.f32 %v1762, %v1973
        %v2020 = vadd.f32 %v1763, %v1978
        %v2021 = vadd.f32 %v1764, %v1983
        %v2022 = vadd.f32 %v1765, %v1988
        %2023 = vst.msk [vmem:[#allocation5] sm:$0xff] %vm547, %v1991
        %2024 = vst.msk [vmem:[#allocation5 + $0x8] sm:$0xff] %vm547, %v1992
        %2025 = vst.msk [vmem:[#allocation5 + $0x10] sm:$0xff] %vm547, %v1993
        %2026 = vst.msk [vmem:[#allocation5 + $0x18] sm:$0xff] %vm547, %v1994
        %2027 = vst.msk [vmem:[#allocation5 + $0x20] sm:$0xff] %vm547, %v1995
        %2028 = vst.msk [vmem:[#allocation5 + $0x28] sm:$0xff] %vm547, %v1996
        %2029 = vst.msk [vmem:[#allocation5 + $0x30] sm:$0xff] %vm547, %v1997
        %2030 = vst.msk [vmem:[#allocation5 + $0x38] sm:$0xff] %vm547, %v1998
        %2031 = vst.msk [vmem:[#allocation5 + $0x40] sm:$0xff] %vm547, %v1999
        %2032 = vst.msk [vmem:[#allocation5 + $0x48] sm:$0xff] %vm547, %v2000
        %2033 = vst.msk [vmem:[#allocation5 + $0x50] sm:$0xff] %vm547, %v2001
        %2034 = vst.msk [vmem:[#allocation5 + $0x58] sm:$0xff] %vm547, %v2002
        %2035 = vst.msk [vmem:[#allocation5 + $0x60] sm:$0xff] %vm547, %v2003
        %2036 = vst.msk [vmem:[#allocation5 + $0x68] sm:$0xff] %vm547, %v2004
        %2037 = vst.msk [vmem:[#allocation5 + $0x70] sm:$0xff] %vm547, %v2005
        %2038 = vst.msk [vmem:[#allocation5 + $0x78] sm:$0xff] %vm547, %v2006
        %2039 = vst.msk [vmem:[#allocation5 + $0x80] sm:$0xff] %vm547, %v2007
        %2040 = vst.msk [vmem:[#allocation5 + $0x88] sm:$0xff] %vm547, %v2008
        %2041 = vst.msk [vmem:[#allocation5 + $0x90] sm:$0xff] %vm547, %v2009
        %2042 = vst.msk [vmem:[#allocation5 + $0x98] sm:$0xff] %vm547, %v2010
        %2043 = vst.msk [vmem:[#allocation5 + $0xa0] sm:$0xff] %vm547, %v2011
        %2044 = vst.msk [vmem:[#allocation5 + $0xa8] sm:$0xff] %vm547, %v2012
        %2045 = vst.msk [vmem:[#allocation5 + $0xb0] sm:$0xff] %vm547, %v2013
        %2046 = vst.msk [vmem:[#allocation5 + $0xb8] sm:$0xff] %vm547, %v2014
        %2047 = vst.msk [vmem:[#allocation5 + $0xc0] sm:$0xff] %vm547, %v2015
        %2048 = vst.msk [vmem:[#allocation5 + $0xc8] sm:$0xff] %vm547, %v2016
        %2049 = vst.msk [vmem:[#allocation5 + $0xd0] sm:$0xff] %vm547, %v2017
        %2050 = vst.msk [vmem:[#allocation5 + $0xd8] sm:$0xff] %vm547, %v2018
        %2051 = vst.msk [vmem:[#allocation5 + $0xe0] sm:$0xff] %vm547, %v2019
        %2052 = vst.msk [vmem:[#allocation5 + $0xe8] sm:$0xff] %vm547, %v2020
        %2053 = vst.msk [vmem:[#allocation5 + $0xf0] sm:$0xff] %vm547, %v2021
        %2054 = vst.msk [vmem:[#allocation5 + $0xf8] sm:$0xff] %vm547, %v2022
        %2055 = vst.msk [vmem:[#allocation3] sm:$0xff] %vm1509, %v965
        %2056 = vst.msk [vmem:[#allocation3 + $0x8] sm:$0xff] %vm1509, %v966
        %2057 = vst.msk [vmem:[#allocation3 + $0x10] sm:$0xff] %vm1509, %v967
        %2058 = vst.msk [vmem:[#allocation3 + $0x18] sm:$0xff] %vm1509, %v968
        %2059 = vst.msk [vmem:[#allocation3 + $0x20] sm:$0xff] %vm1509, %v969
        %2060 = vst.msk [vmem:[#allocation3 + $0x28] sm:$0xff] %vm1509, %v970
        %2061 = vst.msk [vmem:[#allocation3 + $0x30] sm:$0xff] %vm1509, %v971
        %2062 = vst.msk [vmem:[#allocation3 + $0x38] sm:$0xff] %vm1509, %v972
        %2063 = vst.msk [vmem:[#allocation3 + $0x40] sm:$0xff] %vm1509, %v973
        %2064 = vst.msk [vmem:[#allocation3 + $0x48] sm:$0xff] %vm1509, %v974
        %2065 = vst.msk [vmem:[#allocation3 + $0x50] sm:$0xff] %vm1509, %v975
        %2066 = vst.msk [vmem:[#allocation3 + $0x58] sm:$0xff] %vm1509, %v976
        %2067 = vst.msk [vmem:[#allocation3 + $0x60] sm:$0xff] %vm1509, %v977
        %2068 = vst.msk [vmem:[#allocation3 + $0x68] sm:$0xff] %vm1509, %v978
        %2069 = vst.msk [vmem:[#allocation3 + $0x70] sm:$0xff] %vm1509, %v979
        %2070 = vst.msk [vmem:[#allocation3 + $0x78] sm:$0xff] %vm1509, %v980
        %2071 = vst.msk [vmem:[#allocation3 + $0x80] sm:$0xff] %vm1509, %v981
        %2072 = vst.msk [vmem:[#allocation3 + $0x88] sm:$0xff] %vm1509, %v982
        %2073 = vst.msk [vmem:[#allocation3 + $0x90] sm:$0xff] %vm1509, %v983
        %2074 = vst.msk [vmem:[#allocation3 + $0x98] sm:$0xff] %vm1509, %v984
        %2075 = vst.msk [vmem:[#allocation3 + $0xa0] sm:$0xff] %vm1509, %v985
        %2076 = vst.msk [vmem:[#allocation3 + $0xa8] sm:$0xff] %vm1509, %v986
        %2077 = vst.msk [vmem:[#allocation3 + $0xb0] sm:$0xff] %vm1509, %v987
        %2078 = vst.msk [vmem:[#allocation3 + $0xb8] sm:$0xff] %vm1509, %v988
        %2079 = vst.msk [vmem:[#allocation3 + $0xc0] sm:$0xff] %vm1509, %v989
        %2080 = vst.msk [vmem:[#allocation3 + $0xc8] sm:$0xff] %vm1509, %v990
        %2081 = vst.msk [vmem:[#allocation3 + $0xd0] sm:$0xff] %vm1509, %v991
        %2082 = vst.msk [vmem:[#allocation3 + $0xd8] sm:$0xff] %vm1509, %v992
        %2083 = vst.msk [vmem:[#allocation3 + $0xe0] sm:$0xff] %vm1509, %v993
        %2084 = vst.msk [vmem:[#allocation3 + $0xe8] sm:$0xff] %vm1509, %v994
        %2085 = vst.msk [vmem:[#allocation3 + $0xf0] sm:$0xff] %vm1509, %v995
        %2086 = vst.msk [vmem:[#allocation3 + $0xf8] sm:$0xff] %vm1509, %v996
        %p2087 = scmp.eq.s32.totalorder %s30, 1
        // Predicated region
        $region49: #{tpu_custom_call.1} parent=31 // pred_check
          %p2088 = pneg %p2087
        $region50: #{tpu_custom_call.1} parent=31 // pred_check_branch
          %2090 = sbr.rel (%p2088) target = $region52
        $region51: #{tpu_custom_call.1} parent=31 // pred_region
          %v2091 = vld [vmem:[#allocation5] sm:$0xff]
          %v2092 = vld [vmem:[#allocation5 + $0x8] sm:$0xff]
          %v2093 = vld [vmem:[#allocation5 + $0x10] sm:$0xff]
          %v2094 = vld [vmem:[#allocation5 + $0x18] sm:$0xff]
          %v2095 = vld [vmem:[#allocation5 + $0x20] sm:$0xff]
          %v2096 = vld [vmem:[#allocation5 + $0x28] sm:$0xff]
          %v2097 = vld [vmem:[#allocation5 + $0x30] sm:$0xff]
          %v2098 = vld [vmem:[#allocation5 + $0x38] sm:$0xff]
          %v2099 = vld [vmem:[#allocation5 + $0x40] sm:$0xff]
          %v2100 = vld [vmem:[#allocation5 + $0x48] sm:$0xff]
          %v2101 = vld [vmem:[#allocation5 + $0x50] sm:$0xff]
          %v2102 = vld [vmem:[#allocation5 + $0x58] sm:$0xff]
          %v2103 = vld [vmem:[#allocation5 + $0x60] sm:$0xff]
          %v2104 = vld [vmem:[#allocation5 + $0x68] sm:$0xff]
          %v2105 = vld [vmem:[#allocation5 + $0x70] sm:$0xff]
          %v2106 = vld [vmem:[#allocation5 + $0x78] sm:$0xff]
          %v2107 = vld [vmem:[#allocation5 + $0x80] sm:$0xff]
          %v2108 = vld [vmem:[#allocation5 + $0x88] sm:$0xff]
          %v2109 = vld [vmem:[#allocation5 + $0x90] sm:$0xff]
          %v2110 = vld [vmem:[#allocation5 + $0x98] sm:$0xff]
          %v2111 = vld [vmem:[#allocation5 + $0xa0] sm:$0xff]
          %v2112 = vld [vmem:[#allocation5 + $0xa8] sm:$0xff]
          %v2113 = vld [vmem:[#allocation5 + $0xb0] sm:$0xff]
          %v2114 = vld [vmem:[#allocation5 + $0xb8] sm:$0xff]
          %v2115 = vld [vmem:[#allocation5 + $0xc0] sm:$0xff]
          %v2116 = vld [vmem:[#allocation5 + $0xc8] sm:$0xff]
          %v2117 = vld [vmem:[#allocation5 + $0xd0] sm:$0xff]
          %v2118 = vld [vmem:[#allocation5 + $0xd8] sm:$0xff]
          %v2119 = vld [vmem:[#allocation5 + $0xe0] sm:$0xff]
          %v2120 = vld [vmem:[#allocation5 + $0xe8] sm:$0xff]
          %v2121 = vld [vmem:[#allocation5 + $0xf0] sm:$0xff]
          %v2122 = vld [vmem:[#allocation5 + $0xf8] sm:$0xff]
          %v2123 = vld [vmem:[#allocation4] sm:$0xff]
          %v2124 = vld [vmem:[#allocation4 + $0x8] sm:$0xff]
          %v2125 = vld [vmem:[#allocation4 + $0x10] sm:$0xff]
          %v2126 = vld [vmem:[#allocation4 + $0x18] sm:$0xff]
          %v2127 = vld [vmem:[#allocation4 + $0x20] sm:$0xff]
          %v2128 = vld [vmem:[#allocation4 + $0x28] sm:$0xff]
          %v2129 = vld [vmem:[#allocation4 + $0x30] sm:$0xff]
          %v2130 = vld [vmem:[#allocation4 + $0x38] sm:$0xff]
          %v2131 = vld [vmem:[#allocation4 + $0x40] sm:$0xff]
          %v2132 = vld [vmem:[#allocation4 + $0x48] sm:$0xff]
          %v2133 = vld [vmem:[#allocation4 + $0x50] sm:$0xff]
          %v2134 = vld [vmem:[#allocation4 + $0x58] sm:$0xff]
          %v2135 = vld [vmem:[#allocation4 + $0x60] sm:$0xff]
          %v2136 = vld [vmem:[#allocation4 + $0x68] sm:$0xff]
          %v2137 = vld [vmem:[#allocation4 + $0x70] sm:$0xff]
          %v2138 = vld [vmem:[#allocation4 + $0x78] sm:$0xff]
          %v2139 = vld [vmem:[#allocation4 + $0x80] sm:$0xff]
          %v2140 = vld [vmem:[#allocation4 + $0x88] sm:$0xff]
          %v2141 = vld [vmem:[#allocation4 + $0x90] sm:$0xff]
          %v2142 = vld [vmem:[#allocation4 + $0x98] sm:$0xff]
          %v2143 = vld [vmem:[#allocation4 + $0xa0] sm:$0xff]
          %v2144 = vld [vmem:[#allocation4 + $0xa8] sm:$0xff]
          %v2145 = vld [vmem:[#allocation4 + $0xb0] sm:$0xff]
          %v2146 = vld [vmem:[#allocation4 + $0xb8] sm:$0xff]
          %v2147 = vld [vmem:[#allocation4 + $0xc0] sm:$0xff]
          %v2148 = vld [vmem:[#allocation4 + $0xc8] sm:$0xff]
          %v2149 = vld [vmem:[#allocation4 + $0xd0] sm:$0xff]
          %v2150 = vld [vmem:[#allocation4 + $0xd8] sm:$0xff]
          %v2151 = vld [vmem:[#allocation4 + $0xe0] sm:$0xff]
          %v2152 = vld [vmem:[#allocation4 + $0xe8] sm:$0xff]
          %v2153 = vld [vmem:[#allocation4 + $0xf0] sm:$0xff]
          %v2154 = vld [vmem:[#allocation4 + $0xf8] sm:$0xff]
          %2156 = vset.pattern.permute.xlu0 0
          %2157 = vperm.xlu0 %2156, %v2123
          %v2158 = vpop.permute.xlu0 %2157
          %2161 = vset.pattern.permute.xlu0 0
          %2162 = vperm.xlu0 %2161, %v2124
          %v2163 = vpop.permute.xlu0 %2162
          %2166 = vset.pattern.permute.xlu0 0
          %2167 = vperm.xlu0 %2166, %v2125
          %v2168 = vpop.permute.xlu0 %2167
          %2171 = vset.pattern.permute.xlu0 0
          %2172 = vperm.xlu0 %2171, %v2126
          %v2173 = vpop.permute.xlu0 %2172
          %2176 = vset.pattern.permute.xlu0 0
          %2177 = vperm.xlu0 %2176, %v2127
          %v2178 = vpop.permute.xlu0 %2177
          %2181 = vset.pattern.permute.xlu0 0
          %2182 = vperm.xlu0 %2181, %v2128
          %v2183 = vpop.permute.xlu0 %2182
          %2186 = vset.pattern.permute.xlu0 0
          %2187 = vperm.xlu0 %2186, %v2129
          %v2188 = vpop.permute.xlu0 %2187
          %2191 = vset.pattern.permute.xlu0 0
          %2192 = vperm.xlu0 %2191, %v2130
          %v2193 = vpop.permute.xlu0 %2192
          %2196 = vset.pattern.permute.xlu0 0
          %2197 = vperm.xlu0 %2196, %v2131
          %v2198 = vpop.permute.xlu0 %2197
          %2201 = vset.pattern.permute.xlu0 0
          %2202 = vperm.xlu0 %2201, %v2132
          %v2203 = vpop.permute.xlu0 %2202
          %2206 = vset.pattern.permute.xlu0 0
          %2207 = vperm.xlu0 %2206, %v2133
          %v2208 = vpop.permute.xlu0 %2207
          %2211 = vset.pattern.permute.xlu0 0
          %2212 = vperm.xlu0 %2211, %v2134
          %v2213 = vpop.permute.xlu0 %2212
          %2216 = vset.pattern.permute.xlu0 0
          %2217 = vperm.xlu0 %2216, %v2135
          %v2218 = vpop.permute.xlu0 %2217
          %2221 = vset.pattern.permute.xlu0 0
          %2222 = vperm.xlu0 %2221, %v2136
          %v2223 = vpop.permute.xlu0 %2222
          %2226 = vset.pattern.permute.xlu0 0
          %2227 = vperm.xlu0 %2226, %v2137
          %v2228 = vpop.permute.xlu0 %2227
          %2231 = vset.pattern.permute.xlu0 0
          %2232 = vperm.xlu0 %2231, %v2138
          %v2233 = vpop.permute.xlu0 %2232
          %2236 = vset.pattern.permute.xlu0 0
          %2237 = vperm.xlu0 %2236, %v2139
          %v2238 = vpop.permute.xlu0 %2237
          %2241 = vset.pattern.permute.xlu0 0
          %2242 = vperm.xlu0 %2241, %v2140
          %v2243 = vpop.permute.xlu0 %2242
          %2246 = vset.pattern.permute.xlu0 0
          %2247 = vperm.xlu0 %2246, %v2141
          %v2248 = vpop.permute.xlu0 %2247
          %2251 = vset.pattern.permute.xlu0 0
          %2252 = vperm.xlu0 %2251, %v2142
          %v2253 = vpop.permute.xlu0 %2252
          %2256 = vset.pattern.permute.xlu0 0
          %2257 = vperm.xlu0 %2256, %v2143
          %v2258 = vpop.permute.xlu0 %2257
          %2261 = vset.pattern.permute.xlu0 0
          %2262 = vperm.xlu0 %2261, %v2144
          %v2263 = vpop.permute.xlu0 %2262
          %2266 = vset.pattern.permute.xlu0 0
          %2267 = vperm.xlu0 %2266, %v2145
          %v2268 = vpop.permute.xlu0 %2267
          %2271 = vset.pattern.permute.xlu0 0
          %2272 = vperm.xlu0 %2271, %v2146
          %v2273 = vpop.permute.xlu0 %2272
          %2276 = vset.pattern.permute.xlu0 0
          %2277 = vperm.xlu0 %2276, %v2147
          %v2278 = vpop.permute.xlu0 %2277
          %2281 = vset.pattern.permute.xlu0 0
          %2282 = vperm.xlu0 %2281, %v2148
          %v2283 = vpop.permute.xlu0 %2282
          %2286 = vset.pattern.permute.xlu0 0
          %2287 = vperm.xlu0 %2286, %v2149
          %v2288 = vpop.permute.xlu0 %2287
          %2291 = vset.pattern.permute.xlu0 0
          %2292 = vperm.xlu0 %2291, %v2150
          %v2293 = vpop.permute.xlu0 %2292
          %2296 = vset.pattern.permute.xlu0 0
          %2297 = vperm.xlu0 %2296, %v2151
          %v2298 = vpop.permute.xlu0 %2297
          %2301 = vset.pattern.permute.xlu0 0
          %2302 = vperm.xlu0 %2301, %v2152
          %v2303 = vpop.permute.xlu0 %2302
          %2306 = vset.pattern.permute.xlu0 0
          %2307 = vperm.xlu0 %2306, %v2153
          %v2308 = vpop.permute.xlu0 %2307
          %2311 = vset.pattern.permute.xlu0 0
          %2312 = vperm.xlu0 %2311, %v2154
          %v2313 = vpop.permute.xlu0 %2312
          %v2315 = vrcp.pop %v2158
          %v2316 = vmul.f32 %v2091, %v2315
          %v2317 = vrcp.pop %v2163
          %v2318 = vmul.f32 %v2092, %v2317
          %v2319 = vrcp.pop %v2168
          %v2320 = vmul.f32 %v2093, %v2319
          %v2321 = vrcp.pop %v2173
          %v2322 = vmul.f32 %v2094, %v2321
          %v2323 = vrcp.pop %v2178
          %v2324 = vmul.f32 %v2095, %v2323
          %v2325 = vrcp.pop %v2183
          %v2326 = vmul.f32 %v2096, %v2325
          %v2327 = vrcp.pop %v2188
          %v2328 = vmul.f32 %v2097, %v2327
          %v2329 = vrcp.pop %v2193
          %v2330 = vmul.f32 %v2098, %v2329
          %v2331 = vrcp.pop %v2198
          %v2332 = vmul.f32 %v2099, %v2331
          %v2333 = vrcp.pop %v2203
          %v2334 = vmul.f32 %v2100, %v2333
          %v2335 = vrcp.pop %v2208
          %v2336 = vmul.f32 %v2101, %v2335
          %v2337 = vrcp.pop %v2213
          %v2338 = vmul.f32 %v2102, %v2337
          %v2339 = vrcp.pop %v2218
          %v2340 = vmul.f32 %v2103, %v2339
          %v2341 = vrcp.pop %v2223
          %v2342 = vmul.f32 %v2104, %v2341
          %v2343 = vrcp.pop %v2228
          %v2344 = vmul.f32 %v2105, %v2343
          %v2345 = vrcp.pop %v2233
          %v2346 = vmul.f32 %v2106, %v2345
          %v2347 = vrcp.pop %v2238
          %v2348 = vmul.f32 %v2107, %v2347
          %v2349 = vrcp.pop %v2243
          %v2350 = vmul.f32 %v2108, %v2349
          %v2351 = vrcp.pop %v2248
          %v2352 = vmul.f32 %v2109, %v2351
          %v2353 = vrcp.pop %v2253
          %v2354 = vmul.f32 %v2110, %v2353
          %v2355 = vrcp.pop %v2258
          %v2356 = vmul.f32 %v2111, %v2355
          %v2357 = vrcp.pop %v2263
          %v2358 = vmul.f32 %v2112, %v2357
          %v2359 = vrcp.pop %v2268
          %v2360 = vmul.f32 %v2113, %v2359
          %v2361 = vrcp.pop %v2273
          %v2362 = vmul.f32 %v2114, %v2361
          %v2363 = vrcp.pop %v2278
          %v2364 = vmul.f32 %v2115, %v2363
          %v2365 = vrcp.pop %v2283
          %v2366 = vmul.f32 %v2116, %v2365
          %v2367 = vrcp.pop %v2288
          %v2368 = vmul.f32 %v2117, %v2367
          %v2369 = vrcp.pop %v2293
          %v2370 = vmul.f32 %v2118, %v2369
          %v2371 = vrcp.pop %v2298
          %v2372 = vmul.f32 %v2119, %v2371
          %v2373 = vrcp.pop %v2303
          %v2374 = vmul.f32 %v2120, %v2373
          %v2375 = vrcp.pop %v2308
          %v2376 = vmul.f32 %v2121, %v2375
          %v2377 = vrcp.pop %v2313
          %v2378 = vmul.f32 %v2122, %v2377
          %2379 = vxpose.xlu0.b32.start [1/16] %v2316, 128
          %2380 = vxpose.xlu0.b32.cont [2/16] %v2318, 128
          %2381 = vxpose.xlu0.b32.cont [3/16] %v2320, 128
          %2382 = vxpose.xlu0.b32.cont [4/16] %v2322, 128
          %2383 = vxpose.xlu0.b32.cont [5/16] %v2324, 128
          %2384 = vxpose.xlu0.b32.cont [6/16] %v2326, 128
          %2385 = vxpose.xlu0.b32.cont [7/16] %v2328, 128
          %2386 = vxpose.xlu0.b32.cont [8/16] %v2330, 128
          %2387 = vxpose.xlu0.b32.cont [9/16] %v2332, 128
          %2388 = vxpose.xlu0.b32.cont [10/16] %v2334, 128
          %2389 = vxpose.xlu0.b32.cont [11/16] %v2336, 128
          %2390 = vxpose.xlu0.b32.cont [12/16] %v2338, 128
          %2391 = vxpose.xlu0.b32.cont [13/16] %v2340, 128
          %2392 = vxpose.xlu0.b32.cont [14/16] %v2342, 128
          %2393 = vxpose.xlu0.b32.cont [15/16] %v2344, 128
          %2394 = vxpose.xlu0.b32.end [16/16] %v2346, 128
          %v2395 = vpop.trf.xlu0
          %v2396 = vpop.trf.xlu0
          %v2397 = vpop.trf.xlu0
          %v2398 = vpop.trf.xlu0
          %v2399 = vpop.trf.xlu0
          %v2400 = vpop.trf.xlu0
          %v2401 = vpop.trf.xlu0
          %v2402 = vpop.trf.xlu0
          %v2403 = vpop.trf.xlu0
          %v2404 = vpop.trf.xlu0
          %v2405 = vpop.trf.xlu0
          %v2406 = vpop.trf.xlu0
          %v2407 = vpop.trf.xlu0
          %v2408 = vpop.trf.xlu0
          %v2409 = vpop.trf.xlu0
          %v2410 = vpop.trf.xlu0
          %2411 = vxpose.xlu0.b32.start [1/16] %v2348, 128
          %2412 = vxpose.xlu0.b32.cont [2/16] %v2350, 128
          %2413 = vxpose.xlu0.b32.cont [3/16] %v2352, 128
          %2414 = vxpose.xlu0.b32.cont [4/16] %v2354, 128
          %2415 = vxpose.xlu0.b32.cont [5/16] %v2356, 128
          %2416 = vxpose.xlu0.b32.cont [6/16] %v2358, 128
          %2417 = vxpose.xlu0.b32.cont [7/16] %v2360, 128
          %2418 = vxpose.xlu0.b32.cont [8/16] %v2362, 128
          %2419 = vxpose.xlu0.b32.cont [9/16] %v2364, 128
          %2420 = vxpose.xlu0.b32.cont [10/16] %v2366, 128
          %2421 = vxpose.xlu0.b32.cont [11/16] %v2368, 128
          %2422 = vxpose.xlu0.b32.cont [12/16] %v2370, 128
          %2423 = vxpose.xlu0.b32.cont [13/16] %v2372, 128
          %2424 = vxpose.xlu0.b32.cont [14/16] %v2374, 128
          %2425 = vxpose.xlu0.b32.cont [15/16] %v2376, 128
          %2426 = vxpose.xlu0.b32.end [16/16] %v2378, 128
          %v2427 = vpop.trf.xlu0
          %v2428 = vpop.trf.xlu0
          %v2429 = vpop.trf.xlu0
          %v2430 = vpop.trf.xlu0
          %v2431 = vpop.trf.xlu0
          %v2432 = vpop.trf.xlu0
          %v2433 = vpop.trf.xlu0
          %v2434 = vpop.trf.xlu0
          %v2435 = vpop.trf.xlu0
          %v2436 = vpop.trf.xlu0
          %v2437 = vpop.trf.xlu0
          %v2438 = vpop.trf.xlu0
          %v2439 = vpop.trf.xlu0
          %v2440 = vpop.trf.xlu0
          %v2441 = vpop.trf.xlu0
          %v2442 = vpop.trf.xlu0
          %2443 = vst [vmem:[%s298] sm:$0xff] %v2395
          %2444 = vst [vmem:[%s298 + $0x8] sm:$0xff] %v2427
          %2445 = vst [vmem:[%s298 + $0x10] sm:$0xff] %v2396
          %2446 = vst [vmem:[%s298 + $0x18] sm:$0xff] %v2428
          %2447 = vst [vmem:[%s298 + $0x20] sm:$0xff] %v2397
          %2448 = vst [vmem:[%s298 + $0x28] sm:$0xff] %v2429
          %2449 = vst [vmem:[%s298 + $0x30] sm:$0xff] %v2398
          %2450 = vst [vmem:[%s298 + $0x38] sm:$0xff] %v2430
          %2451 = vst [vmem:[%s298 + $0x40] sm:$0xff] %v2399
          %2452 = vst [vmem:[%s298 + $0x48] sm:$0xff] %v2431
          %2453 = vst [vmem:[%s298 + $0x50] sm:$0xff] %v2400
          %2454 = vst [vmem:[%s298 + $0x58] sm:$0xff] %v2432
          %2455 = vst [vmem:[%s298 + $0x60] sm:$0xff] %v2401
          %2456 = vst [vmem:[%s298 + $0x68] sm:$0xff] %v2433
          %2457 = vst [vmem:[%s298 + $0x70] sm:$0xff] %v2402
          %2458 = vst [vmem:[%s298 + $0x78] sm:$0xff] %v2434
        $region52: #{tpu_custom_call.1} parent=31 // pred_fallthru
          _
        %s2459 = sand.u32 %s136, 1
        %s2460 = scalar_lea.sflag [#allocation8], %s2459
        %s2461 = sand.u32 %s136, 1
        %s2462 = smul.addr %s2461, 128
        %s2463 = scalar_lea.vmem [#allocation12], %s2462
        // Predicated region
        $region53: #{tpu_custom_call.1} parent=31 // pred_check
          %p2464 = pneg %p146
        $region54: #{tpu_custom_call.1} parent=31 // pred_check_branch
          %2466 = sbr.rel (%p2464) target = $region56
        $region55: #{tpu_custom_call.1} parent=31 // pred_region
          %s2467 = smul.u32 2, %s29
          %s2469 = ssub.s32 2048, 2048
          %2470 = vsyncadd %s2460, %s2469
          %s2471 = smul.addr %s28, 16
          %s2472 = sadd.s32 %s2467, %s2471
          %s2473 = smul.addr %s2472, 128
          %s2474 = scalar_lea.hbm %s3, %s2473
          %s2475 = sshll.u32 %s2463, 4
          %s2476 = int_to_ptr.vmem [resolvable:$true] %s2475
          %2481 = dma.vmem_to_hbm [thread:$0]  %s2476, 2048, %s2474, %s2460, 256, 256, 16
        $region56: #{tpu_custom_call.1} parent=31 // pred_fallthru
          _
      $region32: #{tpu_custom_call.1} parent=5 // pred_fallthru
        _
      %p2482 = scmp.le.s32.totalorder 2, %s18
      // Predicated region
      $region57: #{tpu_custom_call.1} parent=5 // pred_check
        %p2483 = pneg %p2482
      $region58: #{tpu_custom_call.1} parent=5 // pred_check_branch
        %2485 = sbr.rel (%p2483) target = $region60
      $region59: #{tpu_custom_call.1} parent=5 // pred_region
        %s2486 = ssub.s32 %s18, 2
        // Predicated region
        $region61: #{tpu_custom_call.1} parent=59 // pred_check
          %p2487 = pneg %p152
        $region62: #{tpu_custom_call.1} parent=59 // pred_check_branch
          %2489 = sbr.rel (%p2487) target = $region64
        $region63: #{tpu_custom_call.1} parent=59 // pred_region
          %s2490 = sand.u32 %s137, 1
          %s2491 = scalar_lea.sflag [#allocation8], %s2490
          %s2492 = sand.u32 %s137, 1
          %s2493 = smul.addr %s2492, 128
          %s2494 = scalar_lea.vmem [#allocation12], %s2493
          %2495 = dma.done %s2491, 2048
        $region64: #{tpu_custom_call.1} parent=59 // pred_fallthru
          _
      $region60: #{tpu_custom_call.1} parent=5 // pred_fallthru
        _
    $region6: #{tpu_custom_call.1} parent=1 // loop_footer
      %s22 = sadd.s32 1, %s18
    $region7: #{tpu_custom_call.1} parent=1 // loop_footer_branch
      %17 = sbr.rel target = $region3
    $region8: #{tpu_custom_call.1} parent=1 // loop_exit
      _
    %2496 = vsyncpa [#allocation7], 1
    %s2497 = scalar_lea.sflag [#allocation7], 1
    %2498 = vsyncpa %s2497, 1
    %2499 = vsyncpa [#allocation10], 1
    %s2500 = scalar_lea.sflag [#allocation10], 1
    %2501 = vsyncpa %s2500, 1
    %2502 = vsyncpa [#allocation8], 1
    %s2503 = scalar_lea.sflag [#allocation8], 1
    %2504 = vsyncpa %s2503, 1

</llo_original>
